<compile_context>
chip_gen: v6e
topology: v6e:2x2x1
jax: 0.10.0
libtpu: 0.0.40
codegen_flags: <defaults>
</compile_context>

<pallas_src>
import jax
import jax.numpy as jnp
from jax.experimental import pallas as pl
from jax.experimental.pallas import tpu as pltpu

EPS = 1e-5
IN_FEATURES = 28 * 28
NUM_CLASSES = 10
BN_LAYERS = 4  # fc1..fc4 are followed by BatchNorm1d (+ReLU)

# (in_features, out_features) for fc1..fc6 (exact PyTorch module shapes)
LAYER_DIMS = [(IN_FEATURES, 256), (256, 128), (128, 64), (64, 32), (32, 16), (16, 10)]


def _round_up(n, m):
    return ((n + m - 1) // m) * m


def _make_kernel(true_b, b_pad, tile_b):
    """Build the kernel closure for static (batch, padded batch, tile) sizes."""
    inv_b = 1.0 / float(true_b)
    need_mask = b_pad != true_b

    def kernel(x_ref,
               w1_ref, g1_ref, be1_ref,
               w2_ref, g2_ref, be2_ref,
               w3_ref, g3_ref, be3_ref,
               w4_ref, g4_ref, be4_ref,
               w5_ref, b5_ref, w6_ref, b6_ref,
               out_ref,
               h1_buf, s1_ref, sq1_ref):
        i = pl.program_id(0)

        @pl.when(i == 0)
        def _():
            s1_ref[...] = jnp.zeros_like(s1_ref)
            sq1_ref[...] = jnp.zeros_like(sq1_ref)

        # ---- streamed pass: fc1 on this batch tile (bias dropped: cancelled
        # by the training-mode BN mean subtraction), accumulate BN1 stats.
        h1 = jnp.dot(x_ref[...], w1_ref[...], preferred_element_type=jnp.float32)
        # NOTE: these cross-sublane reduces run on the XLU; if a bundle dump
        # shows the XLU binding at large TILE_B, recompute them as
        # ones(1,TILE_B) @ h1 on the MXU instead.
        s1_ref[...] += jnp.sum(h1, axis=0, keepdims=True)
        sq1_ref[...] += jnp.sum(h1 * h1, axis=0, keepdims=True)
        row0 = pl.multiple_of(i * tile_b, tile_b)
        h1_buf[pl.ds(row0, tile_b), :] = h1.astype(jnp.bfloat16)

        # ---- finalize: BN1 + the small fc2..fc6 tail on the resident batch.
        @pl.when(i == pl.num_programs(0) - 1)
        def _():
            if need_mask:
                rows = jax.lax.broadcasted_iota(jnp.int32, (b_pad, 1), 0)
                mask = (rows < true_b).astype(jnp.float32)
            else:
                mask = None

            def bn_relu(h, col_sum, col_sumsq, g_ref, be_ref):
                # Training-mode BN folded into one scale/shift (all f32).
                mean = col_sum * inv_b
                var = jnp.maximum(col_sumsq * inv_b - mean * mean, 0.0)
                scale = g_ref[...] * jax.lax.rsqrt(var + EPS)   # EUP slot
                shift = be_ref[...] - mean * scale
                a = jnp.maximum(h * scale + shift, 0.0)
                if mask is not None:
                    a = a * mask          # keep padded batch rows exactly zero
                return a.astype(jnp.bfloat16)

            h = bn_relu(h1_buf[...].astype(jnp.float32),
                        s1_ref[...], sq1_ref[...], g1_ref, be1_ref)

            # Layers 2..4: matmul (no bias) -> training-mode BN -> ReLU.
            for w_ref, g_ref, be_ref in ((w2_ref, g2_ref, be2_ref),
                                         (w3_ref, g3_ref, be3_ref),
                                         (w4_ref, g4_ref, be4_ref)):
                hl = jnp.dot(h, w_ref[...], preferred_element_type=jnp.float32)
                h = bn_relu(hl,
                            jnp.sum(hl, axis=0, keepdims=True),
                            jnp.sum(hl * hl, axis=0, keepdims=True),
                            g_ref, be_ref)

            # fc5 -> ReLU (no BN), fc6 logits.
            h = jnp.maximum(
                jnp.dot(h, w5_ref[...], preferred_element_type=jnp.float32)
                + b5_ref[...], 0.0).astype(jnp.bfloat16)
            out_ref[...] = (
                jnp.dot(h, w6_ref[...], preferred_element_type=jnp.float32)
                + b6_ref[...]).astype(out_ref.dtype)

    return kernel


def init_params(key):
    """Deterministic f32 parameters with the exact shapes of the PyTorch module."""
    params = []
    for li, (fin, fout) in enumerate(LAYER_DIMS):
        key, kw, kb = jax.random.split(key, 3)
        bound = 1.0 / (fin ** 0.5)
        w = jax.random.uniform(kw, (fin, fout), jnp.float32, -bound, bound)
        b = jax.random.uniform(kb, (1, fout), jnp.float32, -bound, bound)
        params += [w, b]
        if li < BN_LAYERS:
            params += [jnp.ones((1, fout), jnp.float32),
                       jnp.zeros((1, fout), jnp.float32)]
    return params


def prepare_kernel_params(params_f32):
    """Cast weights to bf16; DROP fc1..fc4 biases (cancelled by training BN)."""
    p = list(params_f32)
    out = []
    idx = 0
    for li, _ in enumerate(LAYER_DIMS):
        w, b = p[idx], p[idx + 1]
        idx += 2
        out.append(w.astype(jnp.bfloat16))
        if li < BN_LAYERS:
            gamma, beta = p[idx], p[idx + 1]
            idx += 2
            out += [gamma, beta]      # f32 BN affine; linear bias dropped
        else:
            out.append(b)             # f32 bias for fc5 / fc6
    return out


def _tiled_vmem_bytes(shape, dtype):
    """VMEM footprint of a 2-D array with (sublane, 128-lane) tile padding."""
    it = jnp.dtype(dtype).itemsize
    sub = max(8, 32 // it)                     # 8 rows (f32) / 16 rows (bf16)
    rows = _round_up(int(shape[-2]), sub)
    cols = _round_up(int(shape[-1]), 128)
    lead = 1
    for d in shape[:-2]:
        lead *= int(d)
    return lead * rows * cols * it


def mlp_with_batchnorm(x_nchw, kernel_params, *, tile_b=None):
    """Fused forward; returns (B, 10) f32 logits."""
    b = x_nchw.shape[0]
    if tile_b is None:
        # Large batches: 256-row tiles (multiple of MXU rows; use 128 on v5e).
        # Small batches: round up to the bf16 sublane pack of 16, single tile.
        tile_b = min(256, _round_up(b, 16))
    b_pad = _round_up(b, tile_b)
    num_tiles = b_pad // tile_b

    # Flatten exactly like x.view(-1, 784); zero-pad batch rows only (they are
    # excluded from all BN statistics); single bf16 cast site; NO K padding.
    x = x_nchw.reshape(b, IN_FEATURES)
    if b_pad != b:
        x = jnp.pad(x, ((0, b_pad - b), (0, 0)))
    x = x.astype(jnp.bfloat16)

    # --- generation-aware scoped-VMEM budget (tile-layout aware). ------------
    vmem_cap = 128 << 20
    try:
        vmem_cap = int(getattr(pltpu.get_tpu_info(), "vmem_capacity_bytes", vmem_cap))
    except Exception:
        pass
    param_bytes = sum(_tiled_vmem_bytes(p.shape, p.dtype) for p in kernel_params)
    x_tile_bytes = _tiled_vmem_bytes((tile_b, IN_FEATURES), jnp.bfloat16)
    out_bytes = _tiled_vmem_bytes((b_pad, NUM_CLASSES), jnp.float32)
    scratch_bytes = (_tiled_vmem_bytes((b_pad, 256), jnp.bfloat16)
                     + 2 * _tiled_vmem_bytes((1, 256), jnp.float32))
    # Whole-batch f32/bf16 temporaries live only inside the finalize step.
    tail_bytes = b_pad * (256 * 4 * 2 + 256 * 2 + 128 * (4 + 2) + 128 * 4)
    needed = 2 * (param_bytes + x_tile_bytes) + out_bytes + scratch_bytes + tail_bytes
    # Cap at ~85% of physical VMEM: ~54 MiB on v7x, ~108 MiB on v5e/v6e.
    vmem_limit = int(min(int(vmem_cap * 0.85),
                         max(needed + (8 << 20), 32 << 20)))

    flops = 2 * b_pad * sum(k * n for k, n in LAYER_DIMS)
    cost = pl.CostEstimate(
        flops=flops,
        transcendentals=256 + 128 + 64 + 32,          # one rsqrt per BN feature
        bytes_accessed=(b_pad * IN_FEATURES * 2
                        + sum(int(p.size) * p.dtype.itemsize for p in kernel_params)
                        + b_pad * NUM_CLASSES * 4),
    )

    in_specs = [pl.BlockSpec((tile_b, IN_FEATURES), lambda i: (i, 0))]
    in_specs += [pl.BlockSpec(p.shape, lambda i: (0, 0)) for p in kernel_params]

    grid_spec = pltpu.PrefetchScalarGridSpec(
        num_scalar_prefetch=0,
        grid=(num_tiles,),
        in_specs=in_specs,
        out_specs=pl.BlockSpec((b_pad, NUM_CLASSES), lambda i: (0, 0)),
        scratch_shapes=[
            pltpu.VMEM((b_pad, 256), jnp.bfloat16),   # resident fc1 activations
            pltpu.VMEM((1, 256), jnp.float32),        # sum(h1) accumulator
            pltpu.VMEM((1, 256), jnp.float32),        # sum(h1^2) accumulator
        ],
    )

    out = pl.pallas_call(
        _make_kernel(b, b_pad, tile_b),
        out_shape=jax.ShapeDtypeStruct((b_pad, NUM_CLASSES), jnp.float32),
        grid_spec=grid_spec,
        compiler_params=pltpu.CompilerParams(
            # Grid axis carries the BN1 accumulation -> must stay sequential.
            dimension_semantics=("arbitrary",),
            vmem_limit_bytes=vmem_limit,
        ),
        cost_estimate=cost,
    )(x, *kernel_params)

    return out[:b] if b_pad != b else out


def reference_forward_f32(x_nchw, params_f32):
    """Pure-f32 reference matching the PyTorch module (training-mode BN)."""
    b = x_nchw.shape[0]
    h = x_nchw.reshape(b, IN_FEATURES).astype(jnp.float32)
    idx = 0
    for li, _ in enumerate(LAYER_DIMS):
        w, bb = params_f32[idx], params_f32[idx + 1]
        idx += 2
        h = h @ w + bb
        if li < BN_LAYERS:
            gamma, beta = params_f32[idx], params_f32[idx + 1]
            idx += 2
            mean = jnp.mean(h, axis=0, keepdims=True)
            var = jnp.mean((h - mean) ** 2, axis=0, keepdims=True)
            h = (h - mean) * jax.lax.rsqrt(var + EPS) * gamma + beta
            h = jnp.maximum(h, 0.0)
        elif li == 4:  # fc5 -> relu
            h = jnp.maximum(h, 0.0)
    return h


def reference_forward_bf16(x_nchw, kernel_params):
    """XLA reference that mirrors the kernel's bf16/f32 numerics (tight check)."""
    b = x_nchw.shape[0]
    h = x_nchw.reshape(b, IN_FEATURES).astype(jnp.bfloat16)
    idx = 0
    for li in range(BN_LAYERS):
        w, gamma, beta = (kernel_params[idx], kernel_params[idx + 1],
                          kernel_params[idx + 2])
        idx += 3
        hl = jnp.dot(h, w, preferred_element_type=jnp.float32)   # no bias
        mean = jnp.mean(hl, axis=0, keepdims=True)
        msq = jnp.mean(hl * hl, axis=0, keepdims=True)
        var = jnp.maximum(msq - mean * mean, 0.0)
        scale = gamma * jax.lax.rsqrt(var + EPS)
        shift = beta - mean * scale
        if li == 0:
            # Mirror the kernel's bf16 VMEM staging of h1 (stats taken in f32).
            hl = hl.astype(jnp.bfloat16).astype(jnp.float32)
        h = jnp.maximum(hl * scale + shift, 0.0).astype(jnp.bfloat16)
    w5, b5 = kernel_params[idx], kernel_params[idx + 1]
    idx += 2
    h = jnp.maximum(jnp.dot(h, w5, preferred_element_type=jnp.float32) + b5,
                    0.0).astype(jnp.bfloat16)
    w6, b6 = kernel_params[idx], kernel_params[idx + 1]
    return jnp.dot(h, w6, preferred_element_type=jnp.float32) + b6


if __name__ == "__main__":
    key = jax.random.PRNGKey(0)
    kx, kx2, kp = jax.random.split(key, 3)

    params_f32 = init_params(kp)
    kernel_params = prepare_kernel_params(params_f32)

    # Case 1: small batch (single grid tile; 8 -> 16 padded rows, masked).
    batch = 8
    x = jax.random.normal(kx, (batch, 1, 28, 28), jnp.float32)   # NCHW-style
    fwd = jax.jit(mlp_with_batchnorm)
    out = jax.block_until_ready(fwd(x, kernel_params))
    assert out.shape == (batch, NUM_CLASSES), out.shape

    # Tight check vs. an XLA reference using the same bf16 numerics.
    err_tight = float(jnp.max(jnp.abs(out - reference_forward_bf16(x, kernel_params))))
    assert err_tight < 1e-2, err_tight

    # Looser semantic check vs. the pure-f32 module math (with fc1..fc4 biases,
    # which cancel exactly under training-mode BN).
    err_sem = float(jnp.max(jnp.abs(out - reference_forward_f32(x, params_f32))))
    assert err_sem < 1e-1, err_sem

    # Case 2: exercise the batch-tiled grid path (3 tiles of 16, 8 masked rows).
    batch2 = 40
    x2 = jax.random.normal(kx2, (batch2, 1, 28, 28), jnp.float32)
    fwd_tiled = jax.jit(lambda xx, pp: mlp_with_batchnorm(xx, pp, tile_b=16))
    out2 = jax.block_until_ready(fwd_tiled(x2, kernel_params))
    assert out2.shape == (batch2, NUM_CLASSES), out2.shape
    err2 = float(jnp.max(jnp.abs(out2 - reference_forward_bf16(x2, kernel_params))))
    assert err2 < 1e-2, err2

    print("KERNEL_OK")
</pallas_src>

<mosaic_0001>
module attributes {stable_mosaic.version = 11 : i64} {
  func.func @kernel(%arg0: i32, %arg1: memref<16x784xbf16, #tpu.memory_space<vmem>>, %arg2: memref<784x256xbf16, #tpu.memory_space<vmem>>, %arg3: memref<1x256xf32, #tpu.memory_space<vmem>>, %arg4: memref<1x256xf32, #tpu.memory_space<vmem>>, %arg5: memref<256x128xbf16, #tpu.memory_space<vmem>>, %arg6: memref<1x128xf32, #tpu.memory_space<vmem>>, %arg7: memref<1x128xf32, #tpu.memory_space<vmem>>, %arg8: memref<128x64xbf16, #tpu.memory_space<vmem>>, %arg9: memref<1x64xf32, #tpu.memory_space<vmem>>, %arg10: memref<1x64xf32, #tpu.memory_space<vmem>>, %arg11: memref<64x32xbf16, #tpu.memory_space<vmem>>, %arg12: memref<1x32xf32, #tpu.memory_space<vmem>>, %arg13: memref<1x32xf32, #tpu.memory_space<vmem>>, %arg14: memref<32x16xbf16, #tpu.memory_space<vmem>>, %arg15: memref<1x16xf32, #tpu.memory_space<vmem>>, %arg16: memref<16x10xbf16, #tpu.memory_space<vmem>>, %arg17: memref<1x10xf32, #tpu.memory_space<vmem>>, %arg18: memref<16x10xf32, #tpu.memory_space<vmem>>, %arg19: memref<16x256xbf16, #tpu.memory_space<vmem>>, %arg20: memref<1x256xf32, #tpu.memory_space<vmem>>, %arg21: memref<1x256xf32, #tpu.memory_space<vmem>>) attributes {dimension_semantics = [#tpu.dimension_semantics<arbitrary>], iteration_bounds = array<i64: 1>, scalar_prefetch = 0 : i64, scratch_operands = 3 : i64, tpu.core_type = #tpu.core_type<tc>, window_params = [{transform_indices = @transform_0, window_bounds = array<i64: 16, 784>}, {pipeline_mode = #tpu.pipeline_mode<synchronous>, transform_indices = @transform_1, window_bounds = array<i64: 784, 256>}, {pipeline_mode = #tpu.pipeline_mode<synchronous>, transform_indices = @transform_2, window_bounds = array<i64: 1, 256>}, {pipeline_mode = #tpu.pipeline_mode<synchronous>, transform_indices = @transform_3, window_bounds = array<i64: 1, 256>}, {pipeline_mode = #tpu.pipeline_mode<synchronous>, transform_indices = @transform_4, window_bounds = array<i64: 256, 128>}, {pipeline_mode = #tpu.pipeline_mode<synchronous>, transform_indices = @transform_5, window_bounds = array<i64: 1, 128>}, {pipeline_mode = #tpu.pipeline_mode<synchronous>, transform_indices = @transform_6, window_bounds = array<i64: 1, 128>}, {pipeline_mode = #tpu.pipeline_mode<synchronous>, transform_indices = @transform_7, window_bounds = array<i64: 128, 64>}, {pipeline_mode = #tpu.pipeline_mode<synchronous>, transform_indices = @transform_8, window_bounds = array<i64: 1, 64>}, {pipeline_mode = #tpu.pipeline_mode<synchronous>, transform_indices = @transform_9, window_bounds = array<i64: 1, 64>}, {pipeline_mode = #tpu.pipeline_mode<synchronous>, transform_indices = @transform_10, window_bounds = array<i64: 64, 32>}, {pipeline_mode = #tpu.pipeline_mode<synchronous>, transform_indices = @transform_11, window_bounds = array<i64: 1, 32>}, {pipeline_mode = #tpu.pipeline_mode<synchronous>, transform_indices = @transform_12, window_bounds = array<i64: 1, 32>}, {pipeline_mode = #tpu.pipeline_mode<synchronous>, transform_indices = @transform_13, window_bounds = array<i64: 32, 16>}, {pipeline_mode = #tpu.pipeline_mode<synchronous>, transform_indices = @transform_14, window_bounds = array<i64: 1, 16>}, {pipeline_mode = #tpu.pipeline_mode<synchronous>, transform_indices = @transform_15, window_bounds = array<i64: 16, 10>}, {pipeline_mode = #tpu.pipeline_mode<synchronous>, transform_indices = @transform_16, window_bounds = array<i64: 1, 10>}, {pipeline_mode = #tpu.pipeline_mode<synchronous>, transform_indices = @transform_17, window_bounds = array<i64: 16, 10>}]} {
    %c0_i32 = arith.constant 0 : i32
    %0 = arith.cmpi eq, %arg0, %c0_i32 : i32
    %1 = arith.extui %0 : i1 to i32
    %c0_i32_0 = arith.constant 0 : i32
    %2 = arith.cmpi ne, %1, %c0_i32_0 : i32
    scf.if %2 {
      %cst_17 = arith.constant 0.000000e+00 : f32
      %25 = vector.broadcast %cst_17 : f32 to vector<1x256xf32>
      %c0_18 = arith.constant 0 : index
      %c0_19 = arith.constant 0 : index
      %26 = vector.load %arg20[%c0_18, %c0_19] : memref<1x256xf32, #tpu.memory_space<vmem>>, vector<1x256xf32>
      tpu.vector_store %arg20[%c0_18, %c0_19], %25 {strides = array<i32>} : memref<1x256xf32, #tpu.memory_space<vmem>>, vector<1x256xf32>,
      %cst_20 = arith.constant 0.000000e+00 : f32
      %27 = vector.broadcast %cst_20 : f32 to vector<1x256xf32>
      %c0_21 = arith.constant 0 : index
      %c0_22 = arith.constant 0 : index
      %28 = vector.load %arg21[%c0_21, %c0_22] : memref<1x256xf32, #tpu.memory_space<vmem>>, vector<1x256xf32>
      tpu.vector_store %arg21[%c0_21, %c0_22], %27 {strides = array<i32>} : memref<1x256xf32, #tpu.memory_space<vmem>>, vector<1x256xf32>,
    } else {
    }
    %c0 = arith.constant 0 : index
    %c0_1 = arith.constant 0 : index
    %3 = vector.load %arg1[%c0, %c0_1] : memref<16x784xbf16, #tpu.memory_space<vmem>>, vector<16x784xbf16>
    %c0_2 = arith.constant 0 : index
    %c0_3 = arith.constant 0 : index
    %4 = vector.load %arg2[%c0_2, %c0_3] : memref<784x256xbf16, #tpu.memory_space<vmem>>, vector<784x256xbf16>
    %cst = arith.constant dense<0.000000e+00> : vector<16x256xf32>
    %5 = tpu.matmul %3, %4, %cst {dimension_numbers = #tpu.dot_dimension_numbers<[1], [0], [0], [1], [0, 0, 1, 1], [], []>} : vector<16x784xbf16>, vector<784x256xbf16>, vector<16x256xf32> -> vector<16x256xf32>
    %c0_4 = arith.constant 0 : index
    %c0_5 = arith.constant 0 : index
    %6 = vector.load %arg20[%c0_4, %c0_5] : memref<1x256xf32, #tpu.memory_space<vmem>>, vector<1x256xf32>
    %cst_6 = arith.constant dense<0.000000e+00> : vector<256xf32>
    %7 = vector.multi_reduction <add>, %5, %cst_6 [0] : vector<16x256xf32> to vector<256xf32>
    %8 = vector.shape_cast %7 : vector<256xf32> to vector<1x256xf32>
    %9 = arith.addf %6, %8 : vector<1x256xf32>
    %c0_7 = arith.constant 0 : index
    %c0_8 = arith.constant 0 : index
    %10 = vector.load %arg20[%c0_7, %c0_8] : memref<1x256xf32, #tpu.memory_space<vmem>>, vector<1x256xf32>
    tpu.vector_store %arg20[%c0_7, %c0_8], %9 {strides = array<i32>} : memref<1x256xf32, #tpu.memory_space<vmem>>, vector<1x256xf32>,
    %c0_9 = arith.constant 0 : index
    %c0_10 = arith.constant 0 : index
    %11 = vector.load %arg21[%c0_9, %c0_10] : memref<1x256xf32, #tpu.memory_space<vmem>>, vector<1x256xf32>
    %12 = arith.mulf %5, %5 : vector<16x256xf32>
    %cst_11 = arith.constant dense<0.000000e+00> : vector<256xf32>
    %13 = vector.multi_reduction <add>, %12, %cst_11 [0] : vector<16x256xf32> to vector<256xf32>
    %14 = vector.shape_cast %13 : vector<256xf32> to vector<1x256xf32>
    %15 = arith.addf %11, %14 : vector<1x256xf32>
    %c0_12 = arith.constant 0 : index
    %c0_13 = arith.constant 0 : index
    %16 = vector.load %arg21[%c0_12, %c0_13] : memref<1x256xf32, #tpu.memory_space<vmem>>, vector<1x256xf32>
    tpu.vector_store %arg21[%c0_12, %c0_13], %15 {strides = array<i32>} : memref<1x256xf32, #tpu.memory_space<vmem>>, vector<1x256xf32>,
    %c16_i32 = arith.constant 16 : i32
    %17 = arith.muli %arg0, %c16_i32 : i32
    %18 = tpu.assume_multiple %17, 16 : i32
    %19 = arith.truncf %5 : vector<16x256xf32> to vector<16x256xbf16>
    %20 = arith.index_cast %18 : i32 to index
    %c0_14 = arith.constant 0 : index
    %21 = vector.load %arg19[%20, %c0_14] : memref<16x256xbf16, #tpu.memory_space<vmem>>, vector<16x256xbf16>
    tpu.vector_store %arg19[%20, %c0_14], %19 {strides = array<i32>} : memref<16x256xbf16, #tpu.memory_space<vmem>>, vector<16x256xbf16>,
    %c0_i32_15 = arith.constant 0 : i32
    %22 = arith.cmpi eq, %arg0, %c0_i32_15 : i32
    %23 = arith.extui %22 : i1 to i32
    %c0_i32_16 = arith.constant 0 : i32
    %24 = arith.cmpi ne, %23, %c0_i32_16 : i32
    scf.if %24 {
      %25 = tpu.iota {dimensions = array<i32: 0>} : vector<16x1xi32>
      %c8_i32 = arith.constant 8 : i32
      %26 = vector.broadcast %c8_i32 : i32 to vector<16x1xi32>
      %27 = arith.cmpi slt, %25, %26 : vector<16x1xi32>
      %28 = arith.extui %27 : vector<16x1xi1> to vector<16x1xi32>
      %29 = arith.sitofp %28 : vector<16x1xi32> to vector<16x1xf32>
      %c0_17 = arith.constant 0 : index
      %c0_18 = arith.constant 0 : index
      %30 = vector.load %arg19[%c0_17, %c0_18] : memref<16x256xbf16, #tpu.memory_space<vmem>>, vector<16x256xbf16>
      %31 = arith.extf %30 : vector<16x256xbf16> to vector<16x256xf32>
      %c0_19 = arith.constant 0 : index
      %c0_20 = arith.constant 0 : index
      %32 = vector.load %arg20[%c0_19, %c0_20] : memref<1x256xf32, #tpu.memory_space<vmem>>, vector<1x256xf32>
      %c0_21 = arith.constant 0 : index
      %c0_22 = arith.constant 0 : index
      %33 = vector.load %arg21[%c0_21, %c0_22] : memref<1x256xf32, #tpu.memory_space<vmem>>, vector<1x256xf32>
      %cst_23 = arith.constant 1.250000e-01 : f32
      %34 = vector.broadcast %cst_23 : f32 to vector<1x256xf32>
      %35 = arith.mulf %32, %34 : vector<1x256xf32>
      %cst_24 = arith.constant 1.250000e-01 : f32
      %36 = vector.broadcast %cst_24 : f32 to vector<1x256xf32>
      %37 = arith.mulf %33, %36 : vector<1x256xf32>
      %38 = arith.mulf %35, %35 : vector<1x256xf32>
      %39 = arith.subf %37, %38 : vector<1x256xf32>
      %cst_25 = arith.constant 0.000000e+00 : f32
      %40 = vector.broadcast %cst_25 : f32 to vector<1x256xf32>
      %41 = arith.maximumf %39, %40 : vector<1x256xf32>
      %c0_26 = arith.constant 0 : index
      %c0_27 = arith.constant 0 : index
      %42 = vector.load %arg3[%c0_26, %c0_27] : memref<1x256xf32, #tpu.memory_space<vmem>>, vector<1x256xf32>
      %cst_28 = arith.constant 9.99999974E-6 : f32
      %43 = vector.broadcast %cst_28 : f32 to vector<1x256xf32>
      %44 = arith.addf %41, %43 : vector<1x256xf32>
      %45 = math.rsqrt %44 : vector<1x256xf32>
      %46 = arith.mulf %42, %45 : vector<1x256xf32>
      %c0_29 = arith.constant 0 : index
      %c0_30 = arith.constant 0 : index
      %47 = vector.load %arg4[%c0_29, %c0_30] : memref<1x256xf32, #tpu.memory_space<vmem>>, vector<1x256xf32>
      %48 = arith.mulf %35, %46 : vector<1x256xf32>
      %49 = arith.subf %47, %48 : vector<1x256xf32>
      %50 = vector.broadcast %46 : vector<1x256xf32> to vector<16x256xf32>
      %51 = arith.mulf %31, %50 : vector<16x256xf32>
      %52 = vector.broadcast %49 : vector<1x256xf32> to vector<16x256xf32>
      %53 = arith.addf %51, %52 : vector<16x256xf32>
      %cst_31 = arith.constant 0.000000e+00 : f32
      %54 = vector.broadcast %cst_31 : f32 to vector<16x256xf32>
      %55 = arith.maximumf %53, %54 : vector<16x256xf32>
      %56 = vector.broadcast %29 : vector<16x1xf32> to vector<16x256xf32>
      %57 = arith.mulf %55, %56 : vector<16x256xf32>
      %58 = arith.truncf %57 : vector<16x256xf32> to vector<16x256xbf16>
      %c0_32 = arith.constant 0 : index
      %c0_33 = arith.constant 0 : index
      %59 = vector.load %arg5[%c0_32, %c0_33] : memref<256x128xbf16, #tpu.memory_space<vmem>>, vector<256x128xbf16>
      %cst_34 = arith.constant dense<0.000000e+00> : vector<16x128xf32>
      %60 = tpu.matmul %58, %59, %cst_34 {dimension_numbers = #tpu.dot_dimension_numbers<[1], [0], [0], [1], [0, 0, 1, 1], [], []>} : vector<16x256xbf16>, vector<256x128xbf16>, vector<16x128xf32> -> vector<16x128xf32>
      %cst_35 = arith.constant dense<0.000000e+00> : vector<128xf32>
      %61 = vector.multi_reduction <add>, %60, %cst_35 [0] : vector<16x128xf32> to vector<128xf32>
      %62 = vector.shape_cast %61 : vector<128xf32> to vector<1x128xf32>
      %63 = arith.mulf %60, %60 : vector<16x128xf32>
      %cst_36 = arith.constant dense<0.000000e+00> : vector<128xf32>
      %64 = vector.multi_reduction <add>, %63, %cst_36 [0] : vector<16x128xf32> to vector<128xf32>
      %65 = vector.shape_cast %64 : vector<128xf32> to vector<1x128xf32>
      %cst_37 = arith.constant 1.250000e-01 : f32
      %66 = vector.broadcast %cst_37 : f32 to vector<1x128xf32>
      %67 = arith.mulf %62, %66 : vector<1x128xf32>
      %cst_38 = arith.constant 1.250000e-01 : f32
      %68 = vector.broadcast %cst_38 : f32 to vector<1x128xf32>
      %69 = arith.mulf %65, %68 : vector<1x128xf32>
      %70 = arith.mulf %67, %67 : vector<1x128xf32>
      %71 = arith.subf %69, %70 : vector<1x128xf32>
      %cst_39 = arith.constant 0.000000e+00 : f32
      %72 = vector.broadcast %cst_39 : f32 to vector<1x128xf32>
      %73 = arith.maximumf %71, %72 : vector<1x128xf32>
      %c0_40 = arith.constant 0 : index
      %c0_41 = arith.constant 0 : index
      %74 = vector.load %arg6[%c0_40, %c0_41] : memref<1x128xf32, #tpu.memory_space<vmem>>, vector<1x128xf32>
      %cst_42 = arith.constant 9.99999974E-6 : f32
      %75 = vector.broadcast %cst_42 : f32 to vector<1x128xf32>
      %76 = arith.addf %73, %75 : vector<1x128xf32>
      %77 = math.rsqrt %76 : vector<1x128xf32>
      %78 = arith.mulf %74, %77 : vector<1x128xf32>
      %c0_43 = arith.constant 0 : index
      %c0_44 = arith.constant 0 : index
      %79 = vector.load %arg7[%c0_43, %c0_44] : memref<1x128xf32, #tpu.memory_space<vmem>>, vector<1x128xf32>
      %80 = arith.mulf %67, %78 : vector<1x128xf32>
      %81 = arith.subf %79, %80 : vector<1x128xf32>
      %82 = vector.broadcast %78 : vector<1x128xf32> to vector<16x128xf32>
      %83 = arith.mulf %60, %82 : vector<16x128xf32>
      %84 = vector.broadcast %81 : vector<1x128xf32> to vector<16x128xf32>
      %85 = arith.addf %83, %84 : vector<16x128xf32>
      %cst_45 = arith.constant 0.000000e+00 : f32
      %86 = vector.broadcast %cst_45 : f32 to vector<16x128xf32>
      %87 = arith.maximumf %85, %86 : vector<16x128xf32>
      %88 = vector.broadcast %29 : vector<16x1xf32> to vector<16x128xf32>
      %89 = arith.mulf %87, %88 : vector<16x128xf32>
      %90 = arith.truncf %89 : vector<16x128xf32> to vector<16x128xbf16>
      %c0_46 = arith.constant 0 : index
      %c0_47 = arith.constant 0 : index
      %91 = vector.load %arg8[%c0_46, %c0_47] : memref<128x64xbf16, #tpu.memory_space<vmem>>, vector<128x64xbf16>
      %cst_48 = arith.constant dense<0.000000e+00> : vector<16x64xf32>
      %92 = tpu.matmul %90, %91, %cst_48 {dimension_numbers = #tpu.dot_dimension_numbers<[1], [0], [0], [1], [0, 0, 1, 1], [], []>} : vector<16x128xbf16>, vector<128x64xbf16>, vector<16x64xf32> -> vector<16x64xf32>
      %cst_49 = arith.constant dense<0.000000e+00> : vector<64xf32>
      %93 = vector.multi_reduction <add>, %92, %cst_49 [0] : vector<16x64xf32> to vector<64xf32>
      %94 = vector.shape_cast %93 : vector<64xf32> to vector<1x64xf32>
      %95 = arith.mulf %92, %92 : vector<16x64xf32>
      %cst_50 = arith.constant dense<0.000000e+00> : vector<64xf32>
      %96 = vector.multi_reduction <add>, %95, %cst_50 [0] : vector<16x64xf32> to vector<64xf32>
      %97 = vector.shape_cast %96 : vector<64xf32> to vector<1x64xf32>
      %cst_51 = arith.constant 1.250000e-01 : f32
      %98 = vector.broadcast %cst_51 : f32 to vector<1x64xf32>
      %99 = arith.mulf %94, %98 : vector<1x64xf32>
      %cst_52 = arith.constant 1.250000e-01 : f32
      %100 = vector.broadcast %cst_52 : f32 to vector<1x64xf32>
      %101 = arith.mulf %97, %100 : vector<1x64xf32>
      %102 = arith.mulf %99, %99 : vector<1x64xf32>
      %103 = arith.subf %101, %102 : vector<1x64xf32>
      %cst_53 = arith.constant 0.000000e+00 : f32
      %104 = vector.broadcast %cst_53 : f32 to vector<1x64xf32>
      %105 = arith.maximumf %103, %104 : vector<1x64xf32>
      %c0_54 = arith.constant 0 : index
      %c0_55 = arith.constant 0 : index
      %106 = vector.load %arg9[%c0_54, %c0_55] : memref<1x64xf32, #tpu.memory_space<vmem>>, vector<1x64xf32>
      %cst_56 = arith.constant 9.99999974E-6 : f32
      %107 = vector.broadcast %cst_56 : f32 to vector<1x64xf32>
      %108 = arith.addf %105, %107 : vector<1x64xf32>
      %109 = math.rsqrt %108 : vector<1x64xf32>
      %110 = arith.mulf %106, %109 : vector<1x64xf32>
      %c0_57 = arith.constant 0 : index
      %c0_58 = arith.constant 0 : index
      %111 = vector.load %arg10[%c0_57, %c0_58] : memref<1x64xf32, #tpu.memory_space<vmem>>, vector<1x64xf32>
      %112 = arith.mulf %99, %110 : vector<1x64xf32>
      %113 = arith.subf %111, %112 : vector<1x64xf32>
      %114 = vector.broadcast %110 : vector<1x64xf32> to vector<16x64xf32>
      %115 = arith.mulf %92, %114 : vector<16x64xf32>
      %116 = vector.broadcast %113 : vector<1x64xf32> to vector<16x64xf32>
      %117 = arith.addf %115, %116 : vector<16x64xf32>
      %cst_59 = arith.constant 0.000000e+00 : f32
      %118 = vector.broadcast %cst_59 : f32 to vector<16x64xf32>
      %119 = arith.maximumf %117, %118 : vector<16x64xf32>
      %120 = vector.broadcast %29 : vector<16x1xf32> to vector<16x64xf32>
      %121 = arith.mulf %119, %120 : vector<16x64xf32>
      %122 = arith.truncf %121 : vector<16x64xf32> to vector<16x64xbf16>
      %c0_60 = arith.constant 0 : index
      %c0_61 = arith.constant 0 : index
      %123 = vector.load %arg11[%c0_60, %c0_61] : memref<64x32xbf16, #tpu.memory_space<vmem>>, vector<64x32xbf16>
      %cst_62 = arith.constant dense<0.000000e+00> : vector<16x32xf32>
      %124 = tpu.matmul %122, %123, %cst_62 {dimension_numbers = #tpu.dot_dimension_numbers<[1], [0], [0], [1], [0, 0, 1, 1], [], []>} : vector<16x64xbf16>, vector<64x32xbf16>, vector<16x32xf32> -> vector<16x32xf32>
      %cst_63 = arith.constant dense<0.000000e+00> : vector<32xf32>
      %125 = vector.multi_reduction <add>, %124, %cst_63 [0] : vector<16x32xf32> to vector<32xf32>
      %126 = vector.shape_cast %125 : vector<32xf32> to vector<1x32xf32>
      %127 = arith.mulf %124, %124 : vector<16x32xf32>
      %cst_64 = arith.constant dense<0.000000e+00> : vector<32xf32>
      %128 = vector.multi_reduction <add>, %127, %cst_64 [0] : vector<16x32xf32> to vector<32xf32>
      %129 = vector.shape_cast %128 : vector<32xf32> to vector<1x32xf32>
      %cst_65 = arith.constant 1.250000e-01 : f32
      %130 = vector.broadcast %cst_65 : f32 to vector<1x32xf32>
      %131 = arith.mulf %126, %130 : vector<1x32xf32>
      %cst_66 = arith.constant 1.250000e-01 : f32
      %132 = vector.broadcast %cst_66 : f32 to vector<1x32xf32>
      %133 = arith.mulf %129, %132 : vector<1x32xf32>
      %134 = arith.mulf %131, %131 : vector<1x32xf32>
      %135 = arith.subf %133, %134 : vector<1x32xf32>
      %cst_67 = arith.constant 0.000000e+00 : f32
      %136 = vector.broadcast %cst_67 : f32 to vector<1x32xf32>
      %137 = arith.maximumf %135, %136 : vector<1x32xf32>
      %c0_68 = arith.constant 0 : index
      %c0_69 = arith.constant 0 : index
      %138 = vector.load %arg12[%c0_68, %c0_69] : memref<1x32xf32, #tpu.memory_space<vmem>>, vector<1x32xf32>
      %cst_70 = arith.constant 9.99999974E-6 : f32
      %139 = vector.broadcast %cst_70 : f32 to vector<1x32xf32>
      %140 = arith.addf %137, %139 : vector<1x32xf32>
      %141 = math.rsqrt %140 : vector<1x32xf32>
      %142 = arith.mulf %138, %141 : vector<1x32xf32>
      %c0_71 = arith.constant 0 : index
      %c0_72 = arith.constant 0 : index
      %143 = vector.load %arg13[%c0_71, %c0_72] : memref<1x32xf32, #tpu.memory_space<vmem>>, vector<1x32xf32>
      %144 = arith.mulf %131, %142 : vector<1x32xf32>
      %145 = arith.subf %143, %144 : vector<1x32xf32>
      %146 = vector.broadcast %142 : vector<1x32xf32> to vector<16x32xf32>
      %147 = arith.mulf %124, %146 : vector<16x32xf32>
      %148 = vector.broadcast %145 : vector<1x32xf32> to vector<16x32xf32>
      %149 = arith.addf %147, %148 : vector<16x32xf32>
      %cst_73 = arith.constant 0.000000e+00 : f32
      %150 = vector.broadcast %cst_73 : f32 to vector<16x32xf32>
      %151 = arith.maximumf %149, %150 : vector<16x32xf32>
      %152 = vector.broadcast %29 : vector<16x1xf32> to vector<16x32xf32>
      %153 = arith.mulf %151, %152 : vector<16x32xf32>
      %154 = arith.truncf %153 : vector<16x32xf32> to vector<16x32xbf16>
      %c0_74 = arith.constant 0 : index
      %c0_75 = arith.constant 0 : index
      %155 = vector.load %arg14[%c0_74, %c0_75] : memref<32x16xbf16, #tpu.memory_space<vmem>>, vector<32x16xbf16>
      %cst_76 = arith.constant dense<0.000000e+00> : vector<16x16xf32>
      %156 = tpu.matmul %154, %155, %cst_76 {dimension_numbers = #tpu.dot_dimension_numbers<[1], [0], [0], [1], [0, 0, 1, 1], [], []>} : vector<16x32xbf16>, vector<32x16xbf16>, vector<16x16xf32> -> vector<16x16xf32>
      %c0_77 = arith.constant 0 : index
      %c0_78 = arith.constant 0 : index
      %157 = vector.load %arg15[%c0_77, %c0_78] : memref<1x16xf32, #tpu.memory_space<vmem>>, vector<1x16xf32>
      %158 = vector.broadcast %157 : vector<1x16xf32> to vector<16x16xf32>
      %159 = arith.addf %156, %158 : vector<16x16xf32>
      %cst_79 = arith.constant 0.000000e+00 : f32
      %160 = vector.broadcast %cst_79 : f32 to vector<16x16xf32>
      %161 = arith.maximumf %159, %160 : vector<16x16xf32>
      %162 = arith.truncf %161 : vector<16x16xf32> to vector<16x16xbf16>
      %c0_80 = arith.constant 0 : index
      %c0_81 = arith.constant 0 : index
      %163 = vector.load %arg16[%c0_80, %c0_81] : memref<16x10xbf16, #tpu.memory_space<vmem>>, vector<16x10xbf16>
      %cst_82 = arith.constant dense<0.000000e+00> : vector<16x10xf32>
      %164 = tpu.matmul %162, %163, %cst_82 {dimension_numbers = #tpu.dot_dimension_numbers<[1], [0], [0], [1], [0, 0, 1, 1], [], []>} : vector<16x16xbf16>, vector<16x10xbf16>, vector<16x10xf32> -> vector<16x10xf32>
      %c0_83 = arith.constant 0 : index
      %c0_84 = arith.constant 0 : index
      %165 = vector.load %arg17[%c0_83, %c0_84] : memref<1x10xf32, #tpu.memory_space<vmem>>, vector<1x10xf32>
      %166 = vector.broadcast %165 : vector<1x10xf32> to vector<16x10xf32>
      %167 = arith.addf %164, %166 : vector<16x10xf32>
      %c0_85 = arith.constant 0 : index
      %c0_86 = arith.constant 0 : index
      %168 = vector.load %arg18[%c0_85, %c0_86] : memref<16x10xf32, #tpu.memory_space<vmem>>, vector<16x10xf32>
      tpu.vector_store %arg18[%c0_85, %c0_86], %167 {strides = array<i32>} : memref<16x10xf32, #tpu.memory_space<vmem>>, vector<16x10xf32>,
    } else {
    }
    return
  }
  func.func @transform_0(%arg0: i32) -> (i32, i32) {
    %c0_i32 = arith.constant 0 : i32
    %c0_i32_0 = arith.constant 0 : i32
    return %arg0, %c0_i32 : i32, i32
  }
  func.func @transform_1(%arg0: i32) -> (i32, i32) {
    %c0_i32 = arith.constant 0 : i32
    %c0_i32_0 = arith.constant 0 : i32
    %c0_i32_1 = arith.constant 0 : i32
    return %c0_i32, %c0_i32_0 : i32, i32
  }
  func.func @transform_2(%arg0: i32) -> (i32, i32) {
    %c0_i32 = arith.constant 0 : i32
    %c0_i32_0 = arith.constant 0 : i32
    %c0_i32_1 = arith.constant 0 : i32
    return %c0_i32, %c0_i32_0 : i32, i32
  }
  func.func @transform_3(%arg0: i32) -> (i32, i32) {
    %c0_i32 = arith.constant 0 : i32
    %c0_i32_0 = arith.constant 0 : i32
    %c0_i32_1 = arith.constant 0 : i32
    return %c0_i32, %c0_i32_0 : i32, i32
  }
  func.func @transform_4(%arg0: i32) -> (i32, i32) {
    %c0_i32 = arith.constant 0 : i32
    %c0_i32_0 = arith.constant 0 : i32
    %c0_i32_1 = arith.constant 0 : i32
    return %c0_i32, %c0_i32_0 : i32, i32
  }
  func.func @transform_5(%arg0: i32) -> (i32, i32) {
    %c0_i32 = arith.constant 0 : i32
    %c0_i32_0 = arith.constant 0 : i32
    %c0_i32_1 = arith.constant 0 : i32
    return %c0_i32, %c0_i32_0 : i32, i32
  }
  func.func @transform_6(%arg0: i32) -> (i32, i32) {
    %c0_i32 = arith.constant 0 : i32
    %c0_i32_0 = arith.constant 0 : i32
    %c0_i32_1 = arith.constant 0 : i32
    return %c0_i32, %c0_i32_0 : i32, i32
  }
  func.func @transform_7(%arg0: i32) -> (i32, i32) {
    %c0_i32 = arith.constant 0 : i32
    %c0_i32_0 = arith.constant 0 : i32
    %c0_i32_1 = arith.constant 0 : i32
    return %c0_i32, %c0_i32_0 : i32, i32
  }
  func.func @transform_8(%arg0: i32) -> (i32, i32) {
    %c0_i32 = arith.constant 0 : i32
    %c0_i32_0 = arith.constant 0 : i32
    %c0_i32_1 = arith.constant 0 : i32
    return %c0_i32, %c0_i32_0 : i32, i32
  }
  func.func @transform_9(%arg0: i32) -> (i32, i32) {
    %c0_i32 = arith.constant 0 : i32
    %c0_i32_0 = arith.constant 0 : i32
    %c0_i32_1 = arith.constant 0 : i32
    return %c0_i32, %c0_i32_0 : i32, i32
  }
  func.func @transform_10(%arg0: i32) -> (i32, i32) {
    %c0_i32 = arith.constant 0 : i32
    %c0_i32_0 = arith.constant 0 : i32
    %c0_i32_1 = arith.constant 0 : i32
    return %c0_i32, %c0_i32_0 : i32, i32
  }
  func.func @transform_11(%arg0: i32) -> (i32, i32) {
    %c0_i32 = arith.constant 0 : i32
    %c0_i32_0 = arith.constant 0 : i32
    %c0_i32_1 = arith.constant 0 : i32
    return %c0_i32, %c0_i32_0 : i32, i32
  }
  func.func @transform_12(%arg0: i32) -> (i32, i32) {
    %c0_i32 = arith.constant 0 : i32
    %c0_i32_0 = arith.constant 0 : i32
    %c0_i32_1 = arith.constant 0 : i32
    return %c0_i32, %c0_i32_0 : i32, i32
  }
  func.func @transform_13(%arg0: i32) -> (i32, i32) {
    %c0_i32 = arith.constant 0 : i32
    %c0_i32_0 = arith.constant 0 : i32
    %c0_i32_1 = arith.constant 0 : i32
    return %c0_i32, %c0_i32_0 : i32, i32
  }
  func.func @transform_14(%arg0: i32) -> (i32, i32) {
    %c0_i32 = arith.constant 0 : i32
    %c0_i32_0 = arith.constant 0 : i32
    %c0_i32_1 = arith.constant 0 : i32
    return %c0_i32, %c0_i32_0 : i32, i32
  }
  func.func @transform_15(%arg0: i32) -> (i32, i32) {
    %c0_i32 = arith.constant 0 : i32
    %c0_i32_0 = arith.constant 0 : i32
    %c0_i32_1 = arith.constant 0 : i32
    return %c0_i32, %c0_i32_0 : i32, i32
  }
  func.func @transform_16(%arg0: i32) -> (i32, i32) {
    %c0_i32 = arith.constant 0 : i32
    %c0_i32_0 = arith.constant 0 : i32
    %c0_i32_1 = arith.constant 0 : i32
    return %c0_i32, %c0_i32_0 : i32, i32
  }
  func.func @transform_17(%arg0: i32) -> (i32, i32) {
    %c0_i32 = arith.constant 0 : i32
    %c0_i32_0 = arith.constant 0 : i32
    %c0_i32_1 = arith.constant 0 : i32
    return %c0_i32, %c0_i32_0 : i32, i32
  }
}

</mosaic_0001>

<llo_original>
// kernel: mlp_with_batchnorm.1
$region0: #{mlp_with_batchnorm.1}
  #allocation0 [shape = 'u32[]', space=smem, size = 0x4, offset = 0x4, fixed_abs, tag = 'smem constant byte address 0x4 - core index']
  #allocation1 [shape = 'u32[144,128]{1,0:T(1,128)}', space=vmem, size = 0x12000, scoped, tag = 'internal scratch']
  #allocation2 [shape = 'bf16[16,256]{1,0:T(8,128)(2,1)}', space=vmem, size = 0x2000, scoped, tag = 'scratch operand']
  #allocation3 [shape = 'f32[1,256]{1,0:T(1,128)}', space=vmem, size = 0x400, scoped, tag = 'scratch operand']
  #allocation4 [shape = 'f32[1,256]{1,0:T(1,128)}', space=vmem, size = 0x400, scoped, tag = 'scratch operand']
  %s0 = inlined_call_operand.vmem [shape: bf16[16,784], index: 0, kind: input, shape index: {}]
  %s1 = inlined_call_operand.hbm [shape: bf16[784,256], index: 1, kind: input, shape index: {}]
  %s2 = inlined_call_operand.vmem [shape: f32[1,256], index: 2, kind: input, shape index: {}]
  %s3 = inlined_call_operand.vmem [shape: f32[1,256], index: 3, kind: input, shape index: {}]
  %s4 = inlined_call_operand.vmem [shape: bf16[256,128], index: 4, kind: input, shape index: {}]
  %s5 = inlined_call_operand.vmem [shape: f32[1,128], index: 5, kind: input, shape index: {}]
  %s6 = inlined_call_operand.vmem [shape: f32[1,128], index: 6, kind: input, shape index: {}]
  %s7 = inlined_call_operand.vmem [shape: bf16[128,64], index: 7, kind: input, shape index: {}]
  %s8 = inlined_call_operand.vmem [shape: f32[1,64], index: 8, kind: input, shape index: {}]
  %s9 = inlined_call_operand.vmem [shape: f32[1,64], index: 9, kind: input, shape index: {}]
  %s10 = inlined_call_operand.vmem [shape: bf16[64,32], index: 10, kind: input, shape index: {}]
  %s11 = inlined_call_operand.vmem [shape: f32[1,32], index: 11, kind: input, shape index: {}]
  %s12 = inlined_call_operand.vmem [shape: f32[1,32], index: 12, kind: input, shape index: {}]
  %s13 = inlined_call_operand.vmem [shape: bf16[32,16], index: 13, kind: input, shape index: {}]
  %s14 = inlined_call_operand.vmem [shape: f32[1,16], index: 14, kind: input, shape index: {}]
  %s15 = inlined_call_operand.vmem [shape: bf16[16,10], index: 15, kind: input, shape index: {}]
  %s16 = inlined_call_operand.vmem [shape: f32[1,10], index: 16, kind: input, shape index: {}]
  %s17 = inlined_call_operand.vmem [shape: f32[16,10], index: 17, kind: output, shape index: {}]
  %s18 = sld [smem:[#allocation0]]
  $region90: #{mlp_with_batchnorm.1} parent=0
    _
  %s20 = ssub.s32 1, %s18
  %s21 = scalar_select 0, %s20, %s18
  $region1: #{mlp_with_batchnorm.1} parent=0
    #allocation5 [shape = 'u8[401408]{0}', space=vmem, size = 0x62000, scoped, tag = 'input window, operand 1, single buffered']
    #allocation6 [shape = 's32[1]{0}', space=sflag, size = 0x4, scoped, tag = 'scoped memory for mlp_with_batchnorm.1']
    %22 = vsyncpa [#allocation6], 0
    // Predicated region
    $region2: #{mlp_with_batchnorm.1} parent=1 // pred_check
      _
    $region3: #{mlp_with_batchnorm.1} parent=1 // pred_check_branch
      %24 = sbr.rel (0) target = $region5
    $region4: #{mlp_with_batchnorm.1} parent=1 // pred_region
      _
    $region5: #{mlp_with_batchnorm.1} parent=1 // pred_fallthru
      _
    // Predicated region
    $region6: #{mlp_with_batchnorm.1} parent=1 // pred_check
      _
    $region7: #{mlp_with_batchnorm.1} parent=1 // pred_check_branch
      %26 = sbr.rel (0) target = $region9
    $region8: #{mlp_with_batchnorm.1} parent=1 // pred_region
      %s28 = ssub.s32 12544, 12544
      %29 = vsyncadd [#allocation6], %s28
      %s30 = sshll.u32 [#allocation5], 4
      %s31 = int_to_ptr.vmem [resolvable:$true] %s30
      %36 = dma.hbm_to_vmem [thread:$0]  %s1, 12544, %s31, [#allocation6], 128, 128, 8
    $region9: #{mlp_with_batchnorm.1} parent=1 // pred_fallthru
      _
    // Predicated region
    $region10: #{mlp_with_batchnorm.1} parent=1 // pred_check
      _
    $region11: #{mlp_with_batchnorm.1} parent=1 // pred_check_branch
      %38 = sbr.rel (0) target = $region13
    $region12: #{mlp_with_batchnorm.1} parent=1 // pred_region
      _
    $region13: #{mlp_with_batchnorm.1} parent=1 // pred_fallthru
      _
    // Predicated region
    $region14: #{mlp_with_batchnorm.1} parent=1 // pred_check
      _
    $region15: #{mlp_with_batchnorm.1} parent=1 // pred_check_branch
      %40 = sbr.rel (0) target = $region17
    $region16: #{mlp_with_batchnorm.1} parent=1 // pred_region
      _
    $region17: #{mlp_with_batchnorm.1} parent=1 // pred_fallthru
      _
    // Predicated region
    $region18: #{mlp_with_batchnorm.1} parent=1 // pred_check
      _
    $region19: #{mlp_with_batchnorm.1} parent=1 // pred_check_branch
      %42 = sbr.rel (0) target = $region21
    $region20: #{mlp_with_batchnorm.1} parent=1 // pred_region
      _
    $region21: #{mlp_with_batchnorm.1} parent=1 // pred_fallthru
      _
    // Predicated region
    $region22: #{mlp_with_batchnorm.1} parent=1 // pred_check
      _
    $region23: #{mlp_with_batchnorm.1} parent=1 // pred_check_branch
      %44 = sbr.rel (0) target = $region25
    $region24: #{mlp_with_batchnorm.1} parent=1 // pred_region
      _
    $region25: #{mlp_with_batchnorm.1} parent=1 // pred_fallthru
      _
    // Predicated region
    $region26: #{mlp_with_batchnorm.1} parent=1 // pred_check
      _
    $region27: #{mlp_with_batchnorm.1} parent=1 // pred_check_branch
      %46 = sbr.rel (0) target = $region29
    $region28: #{mlp_with_batchnorm.1} parent=1 // pred_region
      _
    $region29: #{mlp_with_batchnorm.1} parent=1 // pred_fallthru
      _
    // Predicated region
    $region30: #{mlp_with_batchnorm.1} parent=1 // pred_check
      _
    $region31: #{mlp_with_batchnorm.1} parent=1 // pred_check_branch
      %48 = sbr.rel (0) target = $region33
    $region32: #{mlp_with_batchnorm.1} parent=1 // pred_region
      _
    $region33: #{mlp_with_batchnorm.1} parent=1 // pred_fallthru
      _
    // Predicated region
    $region34: #{mlp_with_batchnorm.1} parent=1 // pred_check
      _
    $region35: #{mlp_with_batchnorm.1} parent=1 // pred_check_branch
      %50 = sbr.rel (0) target = $region37
    $region36: #{mlp_with_batchnorm.1} parent=1 // pred_region
      _
    $region37: #{mlp_with_batchnorm.1} parent=1 // pred_fallthru
      _
    // Predicated region
    $region38: #{mlp_with_batchnorm.1} parent=1 // pred_check
      _
    $region39: #{mlp_with_batchnorm.1} parent=1 // pred_check_branch
      %52 = sbr.rel (0) target = $region41
    $region40: #{mlp_with_batchnorm.1} parent=1 // pred_region
      _
    $region41: #{mlp_with_batchnorm.1} parent=1 // pred_fallthru
      _
    // Predicated region
    $region42: #{mlp_with_batchnorm.1} parent=1 // pred_check
      _
    $region43: #{mlp_with_batchnorm.1} parent=1 // pred_check_branch
      %54 = sbr.rel (0) target = $region45
    $region44: #{mlp_with_batchnorm.1} parent=1 // pred_region
      _
    $region45: #{mlp_with_batchnorm.1} parent=1 // pred_fallthru
      _
    // Predicated region
    $region46: #{mlp_with_batchnorm.1} parent=1 // pred_check
      _
    $region47: #{mlp_with_batchnorm.1} parent=1 // pred_check_branch
      %56 = sbr.rel (0) target = $region49
    $region48: #{mlp_with_batchnorm.1} parent=1 // pred_region
      _
    $region49: #{mlp_with_batchnorm.1} parent=1 // pred_fallthru
      _
    // Predicated region
    $region50: #{mlp_with_batchnorm.1} parent=1 // pred_check
      _
    $region51: #{mlp_with_batchnorm.1} parent=1 // pred_check_branch
      %58 = sbr.rel (0) target = $region53
    $region52: #{mlp_with_batchnorm.1} parent=1 // pred_region
      _
    $region53: #{mlp_with_batchnorm.1} parent=1 // pred_fallthru
      _
    // Predicated region
    $region54: #{mlp_with_batchnorm.1} parent=1 // pred_check
      _
    $region55: #{mlp_with_batchnorm.1} parent=1 // pred_check_branch
      %60 = sbr.rel (0) target = $region57
    $region56: #{mlp_with_batchnorm.1} parent=1 // pred_region
      _
    $region57: #{mlp_with_batchnorm.1} parent=1 // pred_fallthru
      _
    // Predicated region
    $region58: #{mlp_with_batchnorm.1} parent=1 // pred_check
      _
    $region59: #{mlp_with_batchnorm.1} parent=1 // pred_check_branch
      %62 = sbr.rel (0) target = $region61
    $region60: #{mlp_with_batchnorm.1} parent=1 // pred_region
      _
    $region61: #{mlp_with_batchnorm.1} parent=1 // pred_fallthru
      _
    // Predicated region
    $region62: #{mlp_with_batchnorm.1} parent=1 // pred_check
      _
    $region63: #{mlp_with_batchnorm.1} parent=1 // pred_check_branch
      %64 = sbr.rel (0) target = $region65
    $region64: #{mlp_with_batchnorm.1} parent=1 // pred_region
      _
    $region65: #{mlp_with_batchnorm.1} parent=1 // pred_fallthru
      _
    // Predicated region
    $region66: #{mlp_with_batchnorm.1} parent=1 // pred_check
      _
    $region67: #{mlp_with_batchnorm.1} parent=1 // pred_check_branch
      %66 = sbr.rel (0) target = $region69
    $region68: #{mlp_with_batchnorm.1} parent=1 // pred_region
      _
    $region69: #{mlp_with_batchnorm.1} parent=1 // pred_fallthru
      _
    // Predicated region
    $region70: #{mlp_with_batchnorm.1} parent=1 // pred_check
      _
    $region71: #{mlp_with_batchnorm.1} parent=1 // pred_check_branch
      %68 = sbr.rel (0) target = $region73
    $region72: #{mlp_with_batchnorm.1} parent=1 // pred_region
      %69 = dma.done [#allocation6], 12544
    $region73: #{mlp_with_batchnorm.1} parent=1 // pred_fallthru
      _
    %p71 = scmp.eq.s32.totalorder 0, 0
    // Predicated region
    $region74: #{mlp_with_batchnorm.1} parent=1 // pred_check
      %p72 = pneg %p71
    $region75: #{mlp_with_batchnorm.1} parent=1 // pred_check_branch
      %74 = sbr.rel (%p72) target = $region77
    $region76: #{mlp_with_batchnorm.1} parent=1 // pred_region
      %v75 = vlaneseq
      %vm76 = vcmp.ge.s32.totalorder %v75, 0
      %vm77 = vcmp.lt.s32.totalorder %v75, 256
      %vm78 = vmand %vm76, %vm77
      %79 = vst.msk [vmem:[#allocation3] sm:$0x3] %vm78, 0.0
      %80 = vst.msk [vmem:[#allocation4] sm:$0x3] %vm78, 0.0
    $region77: #{mlp_with_batchnorm.1} parent=1 // pred_fallthru
      _
    %v81 = vld [vmem:[%s0] sm:$0xff]
    %v82 = vld [vmem:[%s0 + $0x8] sm:$0xff]
    %v83 = vld [vmem:[%s0 + $0x10] sm:$0xff]
    %v84 = vld [vmem:[%s0 + $0x18] sm:$0xf]
    %v85 = vld [vmem:[%s0 + $0x1c] sm:$0xff]
    %v86 = vld [vmem:[%s0 + $0x24] sm:$0xff]
    %v87 = vld [vmem:[%s0 + $0x2c] sm:$0xff]
    %v88 = vld [vmem:[%s0 + $0x34] sm:$0xf]
    %v89 = vld [vmem:[#allocation5] sm:$0xff]
    %v90 = vld [vmem:[#allocation5 + $0x8] sm:$0xff]
    %v91 = vld [vmem:[#allocation5 + $0x10] sm:$0xff]
    %v92 = vld [vmem:[#allocation5 + $0x18] sm:$0xff]
    %v93 = vld [vmem:[#allocation5 + $0x20] sm:$0xff]
    %v94 = vld [vmem:[#allocation5 + $0x28] sm:$0xff]
    %v95 = vld [vmem:[#allocation5 + $0x30] sm:$0xff]
    %v96 = vld [vmem:[#allocation5 + $0x38] sm:$0xff]
    %v97 = vld [vmem:[#allocation5 + $0x40] sm:$0xff]
    %v98 = vld [vmem:[#allocation5 + $0x48] sm:$0xff]
    %v99 = vld [vmem:[#allocation5 + $0x50] sm:$0xff]
    %v100 = vld [vmem:[#allocation5 + $0x58] sm:$0xff]
    %v101 = vld [vmem:[#allocation5 + $0x60] sm:$0xff]
    %v102 = vld [vmem:[#allocation5 + $0x68] sm:$0xff]
    %v103 = vld [vmem:[#allocation5 + $0x70] sm:$0xff]
    %v104 = vld [vmem:[#allocation5 + $0x78] sm:$0xff]
    %v105 = vld [vmem:[#allocation5 + $0x80] sm:$0xff]
    %v106 = vld [vmem:[#allocation5 + $0x88] sm:$0xff]
    %v107 = vld [vmem:[#allocation5 + $0x90] sm:$0xff]
    %v108 = vld [vmem:[#allocation5 + $0x98] sm:$0xff]
    %v109 = vld [vmem:[#allocation5 + $0xa0] sm:$0xff]
    %v110 = vld [vmem:[#allocation5 + $0xa8] sm:$0xff]
    %v111 = vld [vmem:[#allocation5 + $0xb0] sm:$0xff]
    %v112 = vld [vmem:[#allocation5 + $0xb8] sm:$0xff]
    %v113 = vld [vmem:[#allocation5 + $0xc0] sm:$0xff]
    %v114 = vld [vmem:[#allocation5 + $0xc8] sm:$0xff]
    %v115 = vld [vmem:[#allocation5 + $0xd0] sm:$0xff]
    %v116 = vld [vmem:[#allocation5 + $0xd8] sm:$0xff]
    %v117 = vld [vmem:[#allocation5 + $0xe0] sm:$0xff]
    %v118 = vld [vmem:[#allocation5 + $0xe8] sm:$0xff]
    %v119 = vld [vmem:[#allocation5 + $0xf0] sm:$0xff]
    %v120 = vld [vmem:[#allocation5 + $0xf8] sm:$0xff]
    %v121 = vld [vmem:[#allocation5 + $0x100] sm:$0xff]
    %v122 = vld [vmem:[#allocation5 + $0x108] sm:$0xff]
    %v123 = vld [vmem:[#allocation5 + $0x110] sm:$0xff]
    %v124 = vld [vmem:[#allocation5 + $0x118] sm:$0xff]
    %v125 = vld [vmem:[#allocation5 + $0x120] sm:$0xff]
    %v126 = vld [vmem:[#allocation5 + $0x128] sm:$0xff]
    %v127 = vld [vmem:[#allocation5 + $0x130] sm:$0xff]
    %v128 = vld [vmem:[#allocation5 + $0x138] sm:$0xff]
    %v129 = vld [vmem:[#allocation5 + $0x140] sm:$0xff]
    %v130 = vld [vmem:[#allocation5 + $0x148] sm:$0xff]
    %v131 = vld [vmem:[#allocation5 + $0x150] sm:$0xff]
    %v132 = vld [vmem:[#allocation5 + $0x158] sm:$0xff]
    %v133 = vld [vmem:[#allocation5 + $0x160] sm:$0xff]
    %v134 = vld [vmem:[#allocation5 + $0x168] sm:$0xff]
    %v135 = vld [vmem:[#allocation5 + $0x170] sm:$0xff]
    %v136 = vld [vmem:[#allocation5 + $0x178] sm:$0xff]
    %v137 = vld [vmem:[#allocation5 + $0x180] sm:$0xff]
    %v138 = vld [vmem:[#allocation5 + $0x188] sm:$0xff]
    %v139 = vld [vmem:[#allocation5 + $0x190] sm:$0xff]
    %v140 = vld [vmem:[#allocation5 + $0x198] sm:$0xff]
    %v141 = vld [vmem:[#allocation5 + $0x1a0] sm:$0xff]
    %v142 = vld [vmem:[#allocation5 + $0x1a8] sm:$0xff]
    %v143 = vld [vmem:[#allocation5 + $0x1b0] sm:$0xff]
    %v144 = vld [vmem:[#allocation5 + $0x1b8] sm:$0xff]
    %v145 = vld [vmem:[#allocation5 + $0x1c0] sm:$0xff]
    %v146 = vld [vmem:[#allocation5 + $0x1c8] sm:$0xff]
    %v147 = vld [vmem:[#allocation5 + $0x1d0] sm:$0xff]
    %v148 = vld [vmem:[#allocation5 + $0x1d8] sm:$0xff]
    %v149 = vld [vmem:[#allocation5 + $0x1e0] sm:$0xff]
    %v150 = vld [vmem:[#allocation5 + $0x1e8] sm:$0xff]
    %v151 = vld [vmem:[#allocation5 + $0x1f0] sm:$0xff]
    %v152 = vld [vmem:[#allocation5 + $0x1f8] sm:$0xff]
    %v153 = vld [vmem:[#allocation5 + $0x200] sm:$0xff]
    %v154 = vld [vmem:[#allocation5 + $0x208] sm:$0xff]
    %v155 = vld [vmem:[#allocation5 + $0x210] sm:$0xff]
    %v156 = vld [vmem:[#allocation5 + $0x218] sm:$0xff]
    %v157 = vld [vmem:[#allocation5 + $0x220] sm:$0xff]
    %v158 = vld [vmem:[#allocation5 + $0x228] sm:$0xff]
    %v159 = vld [vmem:[#allocation5 + $0x230] sm:$0xff]
    %v160 = vld [vmem:[#allocation5 + $0x238] sm:$0xff]
    %v161 = vld [vmem:[#allocation5 + $0x240] sm:$0xff]
    %v162 = vld [vmem:[#allocation5 + $0x248] sm:$0xff]
    %v163 = vld [vmem:[#allocation5 + $0x250] sm:$0xff]
    %v164 = vld [vmem:[#allocation5 + $0x258] sm:$0xff]
    %v165 = vld [vmem:[#allocation5 + $0x260] sm:$0xff]
    %v166 = vld [vmem:[#allocation5 + $0x268] sm:$0xff]
    %v167 = vld [vmem:[#allocation5 + $0x270] sm:$0xff]
    %v168 = vld [vmem:[#allocation5 + $0x278] sm:$0xff]
    %v169 = vld [vmem:[#allocation5 + $0x280] sm:$0xff]
    %v170 = vld [vmem:[#allocation5 + $0x288] sm:$0xff]
    %v171 = vld [vmem:[#allocation5 + $0x290] sm:$0xff]
    %v172 = vld [vmem:[#allocation5 + $0x298] sm:$0xff]
    %v173 = vld [vmem:[#allocation5 + $0x2a0] sm:$0xff]
    %v174 = vld [vmem:[#allocation5 + $0x2a8] sm:$0xff]
    %v175 = vld [vmem:[#allocation5 + $0x2b0] sm:$0xff]
    %v176 = vld [vmem:[#allocation5 + $0x2b8] sm:$0xff]
    %v177 = vld [vmem:[#allocation5 + $0x2c0] sm:$0xff]
    %v178 = vld [vmem:[#allocation5 + $0x2c8] sm:$0xff]
    %v179 = vld [vmem:[#allocation5 + $0x2d0] sm:$0xff]
    %v180 = vld [vmem:[#allocation5 + $0x2d8] sm:$0xff]
    %v181 = vld [vmem:[#allocation5 + $0x2e0] sm:$0xff]
    %v182 = vld [vmem:[#allocation5 + $0x2e8] sm:$0xff]
    %v183 = vld [vmem:[#allocation5 + $0x2f0] sm:$0xff]
    %v184 = vld [vmem:[#allocation5 + $0x2f8] sm:$0xff]
    %v185 = vld [vmem:[#allocation5 + $0x300] sm:$0xff]
    %v186 = vld [vmem:[#allocation5 + $0x308] sm:$0xff]
    %v195 = vunpack.c.l.b16 %v81
    %v196 = vunpack.c.h.b16 %v81
    %v197 = vunpack.c.l.b16 %v82
    %v198 = vunpack.c.h.b16 %v82
    %v199 = vunpack.c.l.b16 %v83
    %v200 = vunpack.c.h.b16 %v83
    %v201 = vunpack.c.l.b16 %v84
    %v202 = vunpack.c.l.b16 %v85
    %v203 = vunpack.c.h.b16 %v85
    %v204 = vunpack.c.l.b16 %v86
    %v205 = vunpack.c.h.b16 %v86
    %v206 = vunpack.c.l.b16 %v87
    %v207 = vunpack.c.h.b16 %v87
    %v208 = vunpack.c.l.b16 %v88
    %v209 = vpack.c.b16 %v202, %v195
    %v210 = vpack.c.b16 %v203, %v196
    %v211 = vpack.c.b16 %v204, %v197
    %v212 = vpack.c.b16 %v205, %v198
    %v213 = vpack.c.b16 %v206, %v199
    %v214 = vpack.c.b16 %v207, %v200
    %v215 = vpack.c.b16 %v208, %v201
    %v320 = vunpack.c.l.b16 %v89
    %v321 = vunpack.c.h.b16 %v89
    %v322 = vunpack.c.l.b16 %v90
    %v323 = vunpack.c.h.b16 %v90
    %v324 = vunpack.c.l.b16 %v91
    %v325 = vunpack.c.h.b16 %v91
    %v326 = vunpack.c.l.b16 %v92
    %v327 = vunpack.c.h.b16 %v92
    %v328 = vunpack.c.l.b16 %v93
    %v329 = vunpack.c.h.b16 %v93
    %v330 = vunpack.c.l.b16 %v94
    %v331 = vunpack.c.h.b16 %v94
    %v332 = vunpack.c.l.b16 %v95
    %v333 = vunpack.c.h.b16 %v95
    %v334 = vunpack.c.l.b16 %v96
    %v335 = vunpack.c.h.b16 %v96
    %v336 = vunpack.c.l.b16 %v97
    %v337 = vunpack.c.h.b16 %v97
    %v338 = vunpack.c.l.b16 %v98
    %v339 = vunpack.c.h.b16 %v98
    %v340 = vunpack.c.l.b16 %v99
    %v341 = vunpack.c.h.b16 %v99
    %v342 = vunpack.c.l.b16 %v100
    %v343 = vunpack.c.h.b16 %v100
    %v344 = vunpack.c.l.b16 %v101
    %v345 = vunpack.c.h.b16 %v101
    %v346 = vunpack.c.l.b16 %v102
    %v347 = vunpack.c.h.b16 %v102
    %v348 = vunpack.c.l.b16 %v103
    %v349 = vunpack.c.h.b16 %v103
    %v350 = vunpack.c.l.b16 %v104
    %v351 = vunpack.c.h.b16 %v104
    %v352 = vunpack.c.l.b16 %v105
    %v353 = vunpack.c.h.b16 %v105
    %v354 = vunpack.c.l.b16 %v106
    %v355 = vunpack.c.h.b16 %v106
    %v356 = vunpack.c.l.b16 %v107
    %v357 = vunpack.c.h.b16 %v107
    %v358 = vunpack.c.l.b16 %v108
    %v359 = vunpack.c.h.b16 %v108
    %v360 = vunpack.c.l.b16 %v109
    %v361 = vunpack.c.h.b16 %v109
    %v362 = vunpack.c.l.b16 %v110
    %v363 = vunpack.c.h.b16 %v110
    %v364 = vunpack.c.l.b16 %v111
    %v365 = vunpack.c.h.b16 %v111
    %v366 = vunpack.c.l.b16 %v112
    %v367 = vunpack.c.h.b16 %v112
    %v368 = vunpack.c.l.b16 %v113
    %v369 = vunpack.c.h.b16 %v113
    %v370 = vunpack.c.l.b16 %v114
    %v371 = vunpack.c.h.b16 %v114
    %v372 = vunpack.c.l.b16 %v115
    %v373 = vunpack.c.h.b16 %v115
    %v374 = vunpack.c.l.b16 %v116
    %v375 = vunpack.c.h.b16 %v116
    %v376 = vunpack.c.l.b16 %v117
    %v377 = vunpack.c.h.b16 %v117
    %v378 = vunpack.c.l.b16 %v118
    %v379 = vunpack.c.h.b16 %v118
    %v380 = vunpack.c.l.b16 %v119
    %v381 = vunpack.c.h.b16 %v119
    %v382 = vunpack.c.l.b16 %v120
    %v383 = vunpack.c.h.b16 %v120
    %v384 = vunpack.c.l.b16 %v121
    %v385 = vunpack.c.h.b16 %v121
    %v386 = vunpack.c.l.b16 %v122
    %v387 = vunpack.c.h.b16 %v122
    %v388 = vunpack.c.l.b16 %v123
    %v389 = vunpack.c.h.b16 %v123
    %v390 = vunpack.c.l.b16 %v124
    %v391 = vunpack.c.h.b16 %v124
    %v392 = vunpack.c.l.b16 %v125
    %v393 = vunpack.c.h.b16 %v125
    %v394 = vunpack.c.l.b16 %v126
    %v395 = vunpack.c.h.b16 %v126
    %v396 = vunpack.c.l.b16 %v127
    %v397 = vunpack.c.h.b16 %v127
    %v398 = vunpack.c.l.b16 %v128
    %v399 = vunpack.c.h.b16 %v128
    %v400 = vunpack.c.l.b16 %v129
    %v401 = vunpack.c.h.b16 %v129
    %v402 = vunpack.c.l.b16 %v130
    %v403 = vunpack.c.h.b16 %v130
    %v404 = vunpack.c.l.b16 %v131
    %v405 = vunpack.c.h.b16 %v131
    %v406 = vunpack.c.l.b16 %v132
    %v407 = vunpack.c.h.b16 %v132
    %v408 = vunpack.c.l.b16 %v133
    %v409 = vunpack.c.h.b16 %v133
    %v410 = vunpack.c.l.b16 %v134
    %v411 = vunpack.c.h.b16 %v134
    %v412 = vunpack.c.l.b16 %v135
    %v413 = vunpack.c.h.b16 %v135
    %v414 = vunpack.c.l.b16 %v136
    %v415 = vunpack.c.h.b16 %v136
    %v416 = vunpack.c.l.b16 %v137
    %v417 = vunpack.c.h.b16 %v137
    %v418 = vunpack.c.l.b16 %v138
    %v419 = vunpack.c.h.b16 %v138
    %v420 = vunpack.c.l.b16 %v139
    %v421 = vunpack.c.h.b16 %v139
    %v422 = vunpack.c.l.b16 %v140
    %v423 = vunpack.c.h.b16 %v140
    %v424 = vunpack.c.l.b16 %v141
    %v425 = vunpack.c.h.b16 %v141
    %v426 = vunpack.c.l.b16 %v142
    %v427 = vunpack.c.h.b16 %v142
    %v428 = vunpack.c.l.b16 %v143
    %v429 = vunpack.c.h.b16 %v143
    %v430 = vunpack.c.l.b16 %v144
    %v431 = vunpack.c.h.b16 %v144
    %v432 = vunpack.c.l.b16 %v145
    %v433 = vunpack.c.h.b16 %v145
    %v434 = vunpack.c.l.b16 %v146
    %v435 = vunpack.c.h.b16 %v146
    %v436 = vunpack.c.l.b16 %v147
    %v437 = vunpack.c.h.b16 %v147
    %v438 = vunpack.c.l.b16 %v148
    %v439 = vunpack.c.h.b16 %v148
    %v440 = vunpack.c.l.b16 %v149
    %v441 = vunpack.c.h.b16 %v149
    %v442 = vunpack.c.l.b16 %v150
    %v443 = vunpack.c.h.b16 %v150
    %v444 = vunpack.c.l.b16 %v151
    %v445 = vunpack.c.h.b16 %v151
    %v446 = vunpack.c.l.b16 %v152
    %v447 = vunpack.c.h.b16 %v152
    %v448 = vunpack.c.l.b16 %v153
    %v449 = vunpack.c.h.b16 %v153
    %v450 = vunpack.c.l.b16 %v154
    %v451 = vunpack.c.h.b16 %v154
    %v452 = vunpack.c.l.b16 %v155
    %v453 = vunpack.c.h.b16 %v155
    %v454 = vunpack.c.l.b16 %v156
    %v455 = vunpack.c.h.b16 %v156
    %v456 = vunpack.c.l.b16 %v157
    %v457 = vunpack.c.h.b16 %v157
    %v458 = vunpack.c.l.b16 %v158
    %v459 = vunpack.c.h.b16 %v158
    %v460 = vunpack.c.l.b16 %v159
    %v461 = vunpack.c.h.b16 %v159
    %v462 = vunpack.c.l.b16 %v160
    %v463 = vunpack.c.h.b16 %v160
    %v464 = vunpack.c.l.b16 %v161
    %v465 = vunpack.c.h.b16 %v161
    %v466 = vunpack.c.l.b16 %v162
    %v467 = vunpack.c.h.b16 %v162
    %v468 = vunpack.c.l.b16 %v163
    %v469 = vunpack.c.h.b16 %v163
    %v470 = vunpack.c.l.b16 %v164
    %v471 = vunpack.c.h.b16 %v164
    %v472 = vunpack.c.l.b16 %v165
    %v473 = vunpack.c.h.b16 %v165
    %v474 = vunpack.c.l.b16 %v166
    %v475 = vunpack.c.h.b16 %v166
    %v476 = vunpack.c.l.b16 %v167
    %v477 = vunpack.c.h.b16 %v167
    %v478 = vunpack.c.l.b16 %v168
    %v479 = vunpack.c.h.b16 %v168
    %v480 = vunpack.c.l.b16 %v169
    %v481 = vunpack.c.h.b16 %v169
    %v482 = vunpack.c.l.b16 %v170
    %v483 = vunpack.c.h.b16 %v170
    %v484 = vunpack.c.l.b16 %v171
    %v485 = vunpack.c.h.b16 %v171
    %v486 = vunpack.c.l.b16 %v172
    %v487 = vunpack.c.h.b16 %v172
    %v488 = vunpack.c.l.b16 %v173
    %v489 = vunpack.c.h.b16 %v173
    %v490 = vunpack.c.l.b16 %v174
    %v491 = vunpack.c.h.b16 %v174
    %v492 = vunpack.c.l.b16 %v175
    %v493 = vunpack.c.h.b16 %v175
    %v494 = vunpack.c.l.b16 %v176
    %v495 = vunpack.c.h.b16 %v176
    %v496 = vunpack.c.l.b16 %v177
    %v497 = vunpack.c.h.b16 %v177
    %v498 = vunpack.c.l.b16 %v178
    %v499 = vunpack.c.h.b16 %v178
    %v500 = vunpack.c.l.b16 %v179
    %v501 = vunpack.c.h.b16 %v179
    %v502 = vunpack.c.l.b16 %v180
    %v503 = vunpack.c.h.b16 %v180
    %v504 = vunpack.c.l.b16 %v181
    %v505 = vunpack.c.h.b16 %v181
    %v506 = vunpack.c.l.b16 %v182
    %v507 = vunpack.c.h.b16 %v182
    %v508 = vunpack.c.l.b16 %v183
    %v509 = vunpack.c.h.b16 %v183
    %v510 = vunpack.c.l.b16 %v184
    %v511 = vunpack.c.h.b16 %v184
    %v512 = vunpack.c.l.b16 %v185
    %v513 = vunpack.c.h.b16 %v185
    %v514 = vunpack.c.l.b16 %v186
    %v515 = vunpack.c.h.b16 %v186
    %v516 = vpack.c.b16 %v322, %v320
    %v517 = vpack.c.b16 %v323, %v321
    %v518 = vpack.c.b16 %v326, %v324
    %v519 = vpack.c.b16 %v327, %v325
    %v520 = vpack.c.b16 %v330, %v328
    %v521 = vpack.c.b16 %v331, %v329
    %v522 = vpack.c.b16 %v334, %v332
    %v523 = vpack.c.b16 %v335, %v333
    %v524 = vpack.c.b16 %v338, %v336
    %v525 = vpack.c.b16 %v339, %v337
    %v526 = vpack.c.b16 %v342, %v340
    %v527 = vpack.c.b16 %v343, %v341
    %v528 = vpack.c.b16 %v346, %v344
    %v529 = vpack.c.b16 %v347, %v345
    %v530 = vpack.c.b16 %v350, %v348
    %v531 = vpack.c.b16 %v351, %v349
    %v532 = vpack.c.b16 %v354, %v352
    %v533 = vpack.c.b16 %v355, %v353
    %v534 = vpack.c.b16 %v358, %v356
    %v535 = vpack.c.b16 %v359, %v357
    %v536 = vpack.c.b16 %v362, %v360
    %v537 = vpack.c.b16 %v363, %v361
    %v538 = vpack.c.b16 %v366, %v364
    %v539 = vpack.c.b16 %v367, %v365
    %v540 = vpack.c.b16 %v370, %v368
    %v541 = vpack.c.b16 %v371, %v369
    %v542 = vpack.c.b16 %v374, %v372
    %v543 = vpack.c.b16 %v375, %v373
    %v544 = vpack.c.b16 %v378, %v376
    %v545 = vpack.c.b16 %v379, %v377
    %v546 = vpack.c.b16 %v382, %v380
    %v547 = vpack.c.b16 %v383, %v381
    %v548 = vpack.c.b16 %v386, %v384
    %v549 = vpack.c.b16 %v387, %v385
    %v550 = vpack.c.b16 %v390, %v388
    %v551 = vpack.c.b16 %v391, %v389
    %v552 = vpack.c.b16 %v394, %v392
    %v553 = vpack.c.b16 %v395, %v393
    %v554 = vpack.c.b16 %v398, %v396
    %v555 = vpack.c.b16 %v399, %v397
    %v556 = vpack.c.b16 %v402, %v400
    %v557 = vpack.c.b16 %v403, %v401
    %v558 = vpack.c.b16 %v406, %v404
    %v559 = vpack.c.b16 %v407, %v405
    %v560 = vpack.c.b16 %v410, %v408
    %v561 = vpack.c.b16 %v411, %v409
    %v562 = vpack.c.b16 %v414, %v412
    %v563 = vpack.c.b16 %v415, %v413
    %v564 = vpack.c.b16 %v418, %v416
    %v565 = vpack.c.b16 %v419, %v417
    %v566 = vpack.c.b16 %v422, %v420
    %v567 = vpack.c.b16 %v423, %v421
    %v568 = vpack.c.b16 %v426, %v424
    %v569 = vpack.c.b16 %v427, %v425
    %v570 = vpack.c.b16 %v430, %v428
    %v571 = vpack.c.b16 %v431, %v429
    %v572 = vpack.c.b16 %v434, %v432
    %v573 = vpack.c.b16 %v435, %v433
    %v574 = vpack.c.b16 %v438, %v436
    %v575 = vpack.c.b16 %v439, %v437
    %v576 = vpack.c.b16 %v442, %v440
    %v577 = vpack.c.b16 %v443, %v441
    %v578 = vpack.c.b16 %v446, %v444
    %v579 = vpack.c.b16 %v447, %v445
    %v580 = vpack.c.b16 %v450, %v448
    %v581 = vpack.c.b16 %v451, %v449
    %v582 = vpack.c.b16 %v454, %v452
    %v583 = vpack.c.b16 %v455, %v453
    %v584 = vpack.c.b16 %v458, %v456
    %v585 = vpack.c.b16 %v459, %v457
    %v586 = vpack.c.b16 %v462, %v460
    %v587 = vpack.c.b16 %v463, %v461
    %v588 = vpack.c.b16 %v466, %v464
    %v589 = vpack.c.b16 %v467, %v465
    %v590 = vpack.c.b16 %v470, %v468
    %v591 = vpack.c.b16 %v471, %v469
    %v592 = vpack.c.b16 %v474, %v472
    %v593 = vpack.c.b16 %v475, %v473
    %v594 = vpack.c.b16 %v478, %v476
    %v595 = vpack.c.b16 %v479, %v477
    %v596 = vpack.c.b16 %v482, %v480
    %v597 = vpack.c.b16 %v483, %v481
    %v598 = vpack.c.b16 %v486, %v484
    %v599 = vpack.c.b16 %v487, %v485
    %v600 = vpack.c.b16 %v490, %v488
    %v601 = vpack.c.b16 %v491, %v489
    %v602 = vpack.c.b16 %v494, %v492
    %v603 = vpack.c.b16 %v495, %v493
    %v604 = vpack.c.b16 %v498, %v496
    %v605 = vpack.c.b16 %v499, %v497
    %v606 = vpack.c.b16 %v502, %v500
    %v607 = vpack.c.b16 %v503, %v501
    %v608 = vpack.c.b16 %v506, %v504
    %v609 = vpack.c.b16 %v507, %v505
    %v610 = vpack.c.b16 %v510, %v508
    %v611 = vpack.c.b16 %v511, %v509
    %v612 = vpack.c.b16 %v514, %v512
    %v613 = vpack.c.b16 %v515, %v513
    %vm712 = vcmask 130048
    %v714 = vsel %vm712, %v215, 0
    %716 = vmatprep.subr.bf16.mxu0 %v531
    %717 = vmatpush1.bf16.msra.mxu0 %v530
    %718 = vmatprep.subr.bf16.mxu0 %v529
    %719 = vmatpush1.bf16.msra.mxu0 %v528
    %720 = vmatprep.subr.bf16.mxu0 %v527
    %721 = vmatpush1.bf16.msra.mxu0 %v526
    %722 = vmatprep.subr.bf16.mxu0 %v525
    %723 = vmatpush1.bf16.msra.mxu0 %v524
    %724 = vmatprep.subr.bf16.mxu0 %v523
    %725 = vmatpush1.bf16.msra.mxu0 %v522
    %726 = vmatprep.subr.bf16.mxu0 %v521
    %727 = vmatpush1.bf16.msra.mxu0 %v520
    %728 = vmatprep.subr.bf16.mxu0 %v519
    %729 = vmatpush1.bf16.msra.mxu0 %v518
    %730 = vmatprep.subr.bf16.mxu0 %v517
    %731 = vmatpush1.bf16.msra.mxu0 %v516
    %732 = vmatprep.subr.bf16.mxu0 %v547
    %733 = vmatpush2.bf16.msra.mxu0 %v546
    %734 = vmatprep.subr.bf16.mxu0 %v545
    %735 = vmatpush2.bf16.msra.mxu0 %v544
    %736 = vmatprep.subr.bf16.mxu0 %v543
    %737 = vmatpush2.bf16.msra.mxu0 %v542
    %738 = vmatprep.subr.bf16.mxu0 %v541
    %739 = vmatpush2.bf16.msra.mxu0 %v540
    %740 = vmatprep.subr.bf16.mxu0 %v539
    %741 = vmatpush2.bf16.msra.mxu0 %v538
    %742 = vmatprep.subr.bf16.mxu0 %v537
    %743 = vmatpush2.bf16.msra.mxu0 %v536
    %744 = vmatprep.subr.bf16.mxu0 %v535
    %745 = vmatpush2.bf16.msra.mxu0 %v534
    %746 = vmatprep.subr.bf16.mxu0 %v533
    %747 = vmatpush2.bf16.msra.mxu0 %v532
    %748 = vmatprep.mubr.bf16.mxu0 %v210
    %749 = vmatmul.mubr.bf16.gmra.mxu0 %v209
    %v750 = vpop.f32.mrf.mxu0
    %v751 = vadd.f32 0.0, %v750
    %v752 = vpop.f32.mrf.mxu0
    %v753 = vadd.f32 0.0, %v752
    %v754 = vpop.f32.mrf.mxu0
    %v755 = vadd.f32 0.0, %v754
    %v756 = vpop.f32.mrf.mxu0
    %v757 = vadd.f32 0.0, %v756
    %758 = vdwg.mxu0
    %759 = vmatprep.subr.bf16.mxu0 %v563
    %760 = vmatpush1.bf16.msra.mxu0 %v562
    %761 = vmatprep.subr.bf16.mxu0 %v561
    %762 = vmatpush1.bf16.msra.mxu0 %v560
    %763 = vmatprep.subr.bf16.mxu0 %v559
    %764 = vmatpush1.bf16.msra.mxu0 %v558
    %765 = vmatprep.subr.bf16.mxu0 %v557
    %766 = vmatpush1.bf16.msra.mxu0 %v556
    %767 = vmatprep.subr.bf16.mxu0 %v555
    %768 = vmatpush1.bf16.msra.mxu0 %v554
    %769 = vmatprep.subr.bf16.mxu0 %v553
    %770 = vmatpush1.bf16.msra.mxu0 %v552
    %771 = vmatprep.subr.bf16.mxu0 %v551
    %772 = vmatpush1.bf16.msra.mxu0 %v550
    %773 = vmatprep.subr.bf16.mxu0 %v549
    %774 = vmatpush1.bf16.msra.mxu0 %v548
    %775 = vmatprep.subr.bf16.mxu0 %v579
    %776 = vmatpush2.bf16.msra.mxu0 %v578
    %777 = vmatprep.subr.bf16.mxu0 %v577
    %778 = vmatpush2.bf16.msra.mxu0 %v576
    %779 = vmatprep.subr.bf16.mxu0 %v575
    %780 = vmatpush2.bf16.msra.mxu0 %v574
    %781 = vmatprep.subr.bf16.mxu0 %v573
    %782 = vmatpush2.bf16.msra.mxu0 %v572
    %783 = vmatprep.subr.bf16.mxu0 %v571
    %784 = vmatpush2.bf16.msra.mxu0 %v570
    %785 = vmatprep.subr.bf16.mxu0 %v569
    %786 = vmatpush2.bf16.msra.mxu0 %v568
    %787 = vmatprep.subr.bf16.mxu0 %v567
    %788 = vmatpush2.bf16.msra.mxu0 %v566
    %789 = vmatprep.subr.bf16.mxu0 %v565
    %790 = vmatpush2.bf16.msra.mxu0 %v564
    %791 = vmatprep.mubr.bf16.mxu0 %v212
    %792 = vmatmul.mubr.bf16.gmra.mxu0 %v211
    %v793 = vpop.f32.mrf.mxu0
    %v794 = vadd.f32 %v751, %v793
    %v795 = vpop.f32.mrf.mxu0
    %v796 = vadd.f32 %v753, %v795
    %v797 = vpop.f32.mrf.mxu0
    %v798 = vadd.f32 %v755, %v797
    %v799 = vpop.f32.mrf.mxu0
    %v800 = vadd.f32 %v757, %v799
    %801 = vdwg.mxu0
    %802 = vmatprep.subr.bf16.mxu0 %v595
    %803 = vmatpush1.bf16.msra.mxu0 %v594
    %804 = vmatprep.subr.bf16.mxu0 %v593
    %805 = vmatpush1.bf16.msra.mxu0 %v592
    %806 = vmatprep.subr.bf16.mxu0 %v591
    %807 = vmatpush1.bf16.msra.mxu0 %v590
    %808 = vmatprep.subr.bf16.mxu0 %v589
    %809 = vmatpush1.bf16.msra.mxu0 %v588
    %810 = vmatprep.subr.bf16.mxu0 %v587
    %811 = vmatpush1.bf16.msra.mxu0 %v586
    %812 = vmatprep.subr.bf16.mxu0 %v585
    %813 = vmatpush1.bf16.msra.mxu0 %v584
    %814 = vmatprep.subr.bf16.mxu0 %v583
    %815 = vmatpush1.bf16.msra.mxu0 %v582
    %816 = vmatprep.subr.bf16.mxu0 %v581
    %817 = vmatpush1.bf16.msra.mxu0 %v580
    %818 = vmatprep.subr.bf16.mxu0 %v611
    %819 = vmatpush2.bf16.msra.mxu0 %v610
    %820 = vmatprep.subr.bf16.mxu0 %v609
    %821 = vmatpush2.bf16.msra.mxu0 %v608
    %822 = vmatprep.subr.bf16.mxu0 %v607
    %823 = vmatpush2.bf16.msra.mxu0 %v606
    %824 = vmatprep.subr.bf16.mxu0 %v605
    %825 = vmatpush2.bf16.msra.mxu0 %v604
    %826 = vmatprep.subr.bf16.mxu0 %v603
    %827 = vmatpush2.bf16.msra.mxu0 %v602
    %828 = vmatprep.subr.bf16.mxu0 %v601
    %829 = vmatpush2.bf16.msra.mxu0 %v600
    %830 = vmatprep.subr.bf16.mxu0 %v599
    %831 = vmatpush2.bf16.msra.mxu0 %v598
    %832 = vmatprep.subr.bf16.mxu0 %v597
    %833 = vmatpush2.bf16.msra.mxu0 %v596
    %834 = vmatprep.mubr.bf16.mxu0 %v214
    %835 = vmatmul.mubr.bf16.gmra.mxu0 %v213
    %v836 = vpop.f32.mrf.mxu0
    %v837 = vadd.f32 %v794, %v836
    %v838 = vpop.f32.mrf.mxu0
    %v839 = vadd.f32 %v796, %v838
    %v840 = vpop.f32.mrf.mxu0
    %v841 = vadd.f32 %v798, %v840
    %v842 = vpop.f32.mrf.mxu0
    %v843 = vadd.f32 %v800, %v842
    %844 = vdwg.mxu0
    %845 = vmatprep.subr.bf16.mxu0 0
    %846 = vmatpush1.bf16.msra.mxu0 0
    %847 = vmatprep.subr.bf16.mxu0 0
    %848 = vmatpush1.bf16.msra.mxu0 0
    %849 = vmatprep.subr.bf16.mxu0 0
    %850 = vmatpush1.bf16.msra.mxu0 0
    %851 = vmatprep.subr.bf16.mxu0 0
    %852 = vmatpush1.bf16.msra.mxu0 0
    %853 = vmatprep.subr.bf16.mxu0 0
    %854 = vmatpush1.bf16.msra.mxu0 0
    %855 = vmatprep.subr.bf16.mxu0 0
    %856 = vmatpush1.bf16.msra.mxu0 0
    %857 = vmatprep.subr.bf16.mxu0 0
    %858 = vmatpush1.bf16.msra.mxu0 0
    %859 = vmatprep.subr.bf16.mxu0 %v613
    %860 = vmatpush1.bf16.msra.mxu0 %v612
    %861 = vmatprep.subr.bf16.mxu0 0
    %862 = vmatpush2.bf16.msra.mxu0 0
    %863 = vmatprep.subr.bf16.mxu0 0
    %864 = vmatpush2.bf16.msra.mxu0 0
    %865 = vmatprep.subr.bf16.mxu0 0
    %866 = vmatpush2.bf16.msra.mxu0 0
    %867 = vmatprep.subr.bf16.mxu0 0
    %868 = vmatpush2.bf16.msra.mxu0 0
    %869 = vmatprep.subr.bf16.mxu0 0
    %870 = vmatpush2.bf16.msra.mxu0 0
    %871 = vmatprep.subr.bf16.mxu0 0
    %872 = vmatpush2.bf16.msra.mxu0 0
    %873 = vmatprep.subr.bf16.mxu0 0
    %874 = vmatpush2.bf16.msra.mxu0 0
    %875 = vmatprep.subr.bf16.mxu0 0
    %876 = vmatpush2.bf16.msra.mxu0 0
    %877 = vmatprep.mubr.bf16.mxu0 0
    %878 = vmatmul.mubr.bf16.gmra.mxu0 %v714
    %v879 = vpop.f32.mrf.mxu0
    %v880 = vadd.f32 %v837, %v879
    %v881 = vpop.f32.mrf.mxu0
    %v882 = vadd.f32 %v839, %v881
    %v883 = vpop.f32.mrf.mxu0
    %v884 = vadd.f32 %v841, %v883
    %v885 = vpop.f32.mrf.mxu0
    %v886 = vadd.f32 %v843, %v885
    %887 = vdwg.mxu0
    %v888 = vld [vmem:[#allocation3] sm:$0x3]
    %v889 = vadd.f32 %v880, %v884
    %v890 = vrot.slane %v889, 4
    %v891 = vadd.f32 %v889, %v890
    %v892 = vrot.slane %v891, 2
    %v893 = vadd.f32 %v891, %v892
    %v894 = vrot.slane %v893, 1
    %v895 = vadd.f32 %v893, %v894
    %v896 = vadd.f32 %v882, %v886
    %v897 = vrot.slane %v896, 4
    %v898 = vadd.f32 %v896, %v897
    %v899 = vrot.slane %v898, 2
    %v900 = vadd.f32 %v898, %v899
    %v901 = vrot.slane %v900, 1
    %v902 = vadd.f32 %v900, %v901
    %v905 = vcombine.low %v895, %v902
    %v907 = vunpack.c.l.s4 1966171168
    %v908 = vunpack.c.0.s8 %v907
    %v909 = vlaneseq
    %v910 = vshrl.u32 %v909, 7
    %v911 = vsub.s32 %v908, %v910
    %v912 = vrot.slane %v905, %v911
    %v914 = vunpack.c.l.s4 1966171168
    %v915 = vunpack.c.0.s8 %v914
    %v916 = vlaneseq
    %v917 = vshrl.u32 %v916, 7
    %v918 = vsub.s32 %v915, %v917
    %v919 = vrot.slane %v912, %v918
    %v921 = vadd.f32 %v888, %v919
    %v922 = vlaneseq
    %vm923 = vcmp.ge.s32.totalorder %v922, 0
    %vm924 = vcmp.lt.s32.totalorder %v922, 256
    %vm925 = vmand %vm923, %vm924
    %926 = vst.msk [vmem:[#allocation3] sm:$0x3] %vm925, %v921
    %v927 = vld [vmem:[#allocation4] sm:$0x3]
    %v928 = vmul.f32 %v880, %v880
    %v929 = vmul.f32 %v882, %v882
    %v930 = vmul.f32 %v884, %v884
    %v931 = vmul.f32 %v886, %v886
    %v932 = vadd.f32 %v928, %v930
    %v933 = vrot.slane %v932, 4
    %v934 = vadd.f32 %v932, %v933
    %v935 = vrot.slane %v934, 2
    %v936 = vadd.f32 %v934, %v935
    %v937 = vrot.slane %v936, 1
    %v938 = vadd.f32 %v936, %v937
    %v939 = vadd.f32 %v929, %v931
    %v940 = vrot.slane %v939, 4
    %v941 = vadd.f32 %v939, %v940
    %v942 = vrot.slane %v941, 2
    %v943 = vadd.f32 %v941, %v942
    %v944 = vrot.slane %v943, 1
    %v945 = vadd.f32 %v943, %v944
    %v948 = vcombine.low %v938, %v945
    %v950 = vunpack.c.l.s4 1966171168
    %v951 = vunpack.c.0.s8 %v950
    %v952 = vlaneseq
    %v953 = vshrl.u32 %v952, 7
    %v954 = vsub.s32 %v951, %v953
    %v955 = vrot.slane %v948, %v954
    %v957 = vunpack.c.l.s4 1966171168
    %v958 = vunpack.c.0.s8 %v957
    %v959 = vlaneseq
    %v960 = vshrl.u32 %v959, 7
    %v961 = vsub.s32 %v958, %v960
    %v962 = vrot.slane %v955, %v961
    %v964 = vadd.f32 %v927, %v962
    %965 = vst.msk [vmem:[#allocation4] sm:$0x3] %vm925, %v964
    %s966 = smul.u32 0, 16
    %v967 = vpack.c.bf16 %v884, %v880
    %v968 = vpack.c.bf16 %v886, %v882
    %v971 = vunpack.c.l.b16 %v967
    %v972 = vunpack.c.l.b16 %v968
    %v973 = vunpack.c.h.b16 %v967
    %v974 = vunpack.c.h.b16 %v968
    %v975 = vpack.c.b16 %v972, %v971
    %v976 = vpack.c.b16 %v974, %v973
    %s979 = sshra.s32 %s966, 3
    %s980 = sand.u32 %s966, 7
    %s981 = smul.u32 %s979, 2
    %s982 = smul.addr %s981, 4
    %s983 = scalar_lea.vmem [#allocation2], %s982
    %984 = vst [vmem:[%s983] sm:$0xff] %v975
    %985 = vst [vmem:[%s983 + $0x8] sm:$0xff] %v976
    // Predicated region
    $region78: #{mlp_with_batchnorm.1} parent=1 // pred_check
      %p986 = pneg %p71
    $region79: #{mlp_with_batchnorm.1} parent=1 // pred_check_branch
      %988 = sbr.rel (%p986) target = $region81
    $region80: #{mlp_with_batchnorm.1} parent=1 // pred_region
      %v989 = vlaneseq
      %v990 = vshrl.u32 %v989, 7
      %v991 = vadd.s32 %v990, 8
      %vm992 = vcmp.lt.s32.totalorder %v990, 8
      %vm993 = vcmp.lt.s32.totalorder %v991, 8
      %v994 = vsel %vm992, 1, 0
      %v995 = vsel %vm993, 1, 0
      %v996 = vcvt.s32.f32 %v994
      %v997 = vcvt.s32.f32 %v995
      %v998 = vld [vmem:[#allocation2] sm:$0xff]
      %v999 = vld [vmem:[#allocation2 + $0x8] sm:$0xff]
      %v1000 = vunpack.c.l.bf16 %v998
      %v1001 = vunpack.c.h.bf16 %v998
      %v1002 = vunpack.c.l.bf16 %v999
      %v1003 = vunpack.c.h.bf16 %v999
      %v1004 = vld [vmem:[#allocation3] sm:$0x3]
      %v1005 = vld [vmem:[#allocation4] sm:$0x3]
      %v1006 = vmul.f32 %v1004, 0.125
      %v1007 = vmul.f32 %v1005, 0.125
      %v1008 = vmul.f32 %v1006, %v1006
      %v1009 = vsub.f32 %v1007, %v1008
      %v1010 = vmax.f32 %v1009, 0.0
      %v1011 = vld [vmem:[%s2] sm:$0x3]
      %v1012 = vadd.f32 %v1010, 1e-05
      %v1013 = vrsqrt.pop %v1012
      %v1014 = vmul.f32 %v1011, %v1013
      %v1015 = vld [vmem:[%s3] sm:$0x3]
      %v1016 = vmul.f32 %v1006, %v1014
      %v1017 = vsub.f32 %v1015, %v1016
      %v1019 = vlaneseq
      %v1020 = vshrl.u32 %v1019, 7
      %v1021 = vsub.s32 0, %v1020
      %v1022 = vrot.slane %v1014, %v1021
      %v1023 = vlaneseq
      %v1024 = vshrl.u32 %v1023, 7
      %v1025 = vsub.s32 1, %v1024
      %v1026 = vrot.slane %v1014, %v1025
      %v1029 = vmul.f32 %v1000, %v1022
      %v1030 = vmul.f32 %v1001, %v1026
      %v1031 = vmul.f32 %v1002, %v1022
      %v1032 = vmul.f32 %v1003, %v1026
      %v1034 = vlaneseq
      %v1035 = vshrl.u32 %v1034, 7
      %v1036 = vsub.s32 0, %v1035
      %v1037 = vrot.slane %v1017, %v1036
      %v1038 = vlaneseq
      %v1039 = vshrl.u32 %v1038, 7
      %v1040 = vsub.s32 1, %v1039
      %v1041 = vrot.slane %v1017, %v1040
      %v1044 = vadd.f32 %v1029, %v1037
      %v1045 = vadd.f32 %v1030, %v1041
      %v1046 = vadd.f32 %v1031, %v1037
      %v1047 = vadd.f32 %v1032, %v1041
      %v1048 = vmax.f32 %v1044, 0.0
      %v1049 = vmax.f32 %v1045, 0.0
      %v1050 = vmax.f32 %v1046, 0.0
      %v1051 = vmax.f32 %v1047, 0.0
      %v1052 = vmul.f32 %v1048, %v996
      %v1053 = vmul.f32 %v1049, %v996
      %v1054 = vmul.f32 %v1050, %v997
      %v1055 = vmul.f32 %v1051, %v997
      %v1056 = vpack.c.bf16 %v1054, %v1052
      %v1057 = vpack.c.bf16 %v1055, %v1053
      %v1058 = vld [vmem:[%s4] sm:$0xf]
      %v1059 = vld [vmem:[%s4 + $0x4] sm:$0xf]
      %v1060 = vld [vmem:[%s4 + $0x8] sm:$0xf]
      %v1061 = vld [vmem:[%s4 + $0xc] sm:$0xf]
      %v1062 = vld [vmem:[%s4 + $0x10] sm:$0xf]
      %v1063 = vld [vmem:[%s4 + $0x14] sm:$0xf]
      %v1064 = vld [vmem:[%s4 + $0x18] sm:$0xf]
      %v1065 = vld [vmem:[%s4 + $0x1c] sm:$0xf]
      %v1066 = vld [vmem:[%s4 + $0x20] sm:$0xf]
      %v1067 = vld [vmem:[%s4 + $0x24] sm:$0xf]
      %v1068 = vld [vmem:[%s4 + $0x28] sm:$0xf]
      %v1069 = vld [vmem:[%s4 + $0x2c] sm:$0xf]
      %v1070 = vld [vmem:[%s4 + $0x30] sm:$0xf]
      %v1071 = vld [vmem:[%s4 + $0x34] sm:$0xf]
      %v1072 = vld [vmem:[%s4 + $0x38] sm:$0xf]
      %v1073 = vld [vmem:[%s4 + $0x3c] sm:$0xf]
      %v1074 = vld [vmem:[%s4 + $0x40] sm:$0xf]
      %v1075 = vld [vmem:[%s4 + $0x44] sm:$0xf]
      %v1076 = vld [vmem:[%s4 + $0x48] sm:$0xf]
      %v1077 = vld [vmem:[%s4 + $0x4c] sm:$0xf]
      %v1078 = vld [vmem:[%s4 + $0x50] sm:$0xf]
      %v1079 = vld [vmem:[%s4 + $0x54] sm:$0xf]
      %v1080 = vld [vmem:[%s4 + $0x58] sm:$0xf]
      %v1081 = vld [vmem:[%s4 + $0x5c] sm:$0xf]
      %v1082 = vld [vmem:[%s4 + $0x60] sm:$0xf]
      %v1083 = vld [vmem:[%s4 + $0x64] sm:$0xf]
      %v1084 = vld [vmem:[%s4 + $0x68] sm:$0xf]
      %v1085 = vld [vmem:[%s4 + $0x6c] sm:$0xf]
      %v1086 = vld [vmem:[%s4 + $0x70] sm:$0xf]
      %v1087 = vld [vmem:[%s4 + $0x74] sm:$0xf]
      %v1088 = vld [vmem:[%s4 + $0x78] sm:$0xf]
      %v1089 = vld [vmem:[%s4 + $0x7c] sm:$0xf]
      %v1122 = vunpack.c.l.b16 %v1058
      %v1123 = vunpack.c.l.b16 %v1059
      %v1124 = vunpack.c.l.b16 %v1060
      %v1125 = vunpack.c.l.b16 %v1061
      %v1126 = vunpack.c.l.b16 %v1062
      %v1127 = vunpack.c.l.b16 %v1063
      %v1128 = vunpack.c.l.b16 %v1064
      %v1129 = vunpack.c.l.b16 %v1065
      %v1130 = vunpack.c.l.b16 %v1066
      %v1131 = vunpack.c.l.b16 %v1067
      %v1132 = vunpack.c.l.b16 %v1068
      %v1133 = vunpack.c.l.b16 %v1069
      %v1134 = vunpack.c.l.b16 %v1070
      %v1135 = vunpack.c.l.b16 %v1071
      %v1136 = vunpack.c.l.b16 %v1072
      %v1137 = vunpack.c.l.b16 %v1073
      %v1138 = vunpack.c.l.b16 %v1074
      %v1139 = vunpack.c.l.b16 %v1075
      %v1140 = vunpack.c.l.b16 %v1076
      %v1141 = vunpack.c.l.b16 %v1077
      %v1142 = vunpack.c.l.b16 %v1078
      %v1143 = vunpack.c.l.b16 %v1079
      %v1144 = vunpack.c.l.b16 %v1080
      %v1145 = vunpack.c.l.b16 %v1081
      %v1146 = vunpack.c.l.b16 %v1082
      %v1147 = vunpack.c.l.b16 %v1083
      %v1148 = vunpack.c.l.b16 %v1084
      %v1149 = vunpack.c.l.b16 %v1085
      %v1150 = vunpack.c.l.b16 %v1086
      %v1151 = vunpack.c.l.b16 %v1087
      %v1152 = vunpack.c.l.b16 %v1088
      %v1153 = vunpack.c.l.b16 %v1089
      %v1154 = vpack.c.b16 %v1123, %v1122
      %v1155 = vpack.c.b16 %v1125, %v1124
      %v1156 = vpack.c.b16 %v1127, %v1126
      %v1157 = vpack.c.b16 %v1129, %v1128
      %v1158 = vpack.c.b16 %v1131, %v1130
      %v1159 = vpack.c.b16 %v1133, %v1132
      %v1160 = vpack.c.b16 %v1135, %v1134
      %v1161 = vpack.c.b16 %v1137, %v1136
      %v1162 = vpack.c.b16 %v1139, %v1138
      %v1163 = vpack.c.b16 %v1141, %v1140
      %v1164 = vpack.c.b16 %v1143, %v1142
      %v1165 = vpack.c.b16 %v1145, %v1144
      %v1166 = vpack.c.b16 %v1147, %v1146
      %v1167 = vpack.c.b16 %v1149, %v1148
      %v1168 = vpack.c.b16 %v1151, %v1150
      %v1169 = vpack.c.b16 %v1153, %v1152
      %1186 = vmatprep.subr.bf16.mxu0 0
      %1187 = vmatpush1.bf16.msra.mxu0 %v1161
      %1188 = vmatprep.subr.bf16.mxu0 0
      %1189 = vmatpush1.bf16.msra.mxu0 %v1160
      %1190 = vmatprep.subr.bf16.mxu0 0
      %1191 = vmatpush1.bf16.msra.mxu0 %v1159
      %1192 = vmatprep.subr.bf16.mxu0 0
      %1193 = vmatpush1.bf16.msra.mxu0 %v1158
      %1194 = vmatprep.subr.bf16.mxu0 0
      %1195 = vmatpush1.bf16.msra.mxu0 %v1157
      %1196 = vmatprep.subr.bf16.mxu0 0
      %1197 = vmatpush1.bf16.msra.mxu0 %v1156
      %1198 = vmatprep.subr.bf16.mxu0 0
      %1199 = vmatpush1.bf16.msra.mxu0 %v1155
      %1200 = vmatprep.subr.bf16.mxu0 0
      %1201 = vmatpush1.bf16.msra.mxu0 %v1154
      %1202 = vmatprep.subr.bf16.mxu0 0
      %1203 = vmatpush2.bf16.msra.mxu0 %v1169
      %1204 = vmatprep.subr.bf16.mxu0 0
      %1205 = vmatpush2.bf16.msra.mxu0 %v1168
      %1206 = vmatprep.subr.bf16.mxu0 0
      %1207 = vmatpush2.bf16.msra.mxu0 %v1167
      %1208 = vmatprep.subr.bf16.mxu0 0
      %1209 = vmatpush2.bf16.msra.mxu0 %v1166
      %1210 = vmatprep.subr.bf16.mxu0 0
      %1211 = vmatpush2.bf16.msra.mxu0 %v1165
      %1212 = vmatprep.subr.bf16.mxu0 0
      %1213 = vmatpush2.bf16.msra.mxu0 %v1164
      %1214 = vmatprep.subr.bf16.mxu0 0
      %1215 = vmatpush2.bf16.msra.mxu0 %v1163
      %1216 = vmatprep.subr.bf16.mxu0 0
      %1217 = vmatpush2.bf16.msra.mxu0 %v1162
      %1218 = vmatprep.mubr.bf16.mxu0 %v1057
      %1219 = vmatmul.mubr.bf16.gmra.mxu0 %v1056
      %v1220 = vpop.f32.mrf.mxu0
      %v1221 = vadd.f32 0.0, %v1220
      %v1222 = vpop.f32.mrf.mxu0
      %v1223 = vpop.f32.mrf.mxu0
      %v1224 = vadd.f32 0.0, %v1223
      %v1225 = vpop.f32.mrf.mxu0
      %1226 = vdwg.mxu0
      %v1227 = vadd.f32 %v1221, %v1224
      %v1228 = vrot.slane %v1227, 4
      %v1229 = vadd.f32 %v1227, %v1228
      %v1230 = vrot.slane %v1229, 2
      %v1231 = vadd.f32 %v1229, %v1230
      %v1232 = vrot.slane %v1231, 1
      %v1233 = vadd.f32 %v1231, %v1232
      %v1234 = vmul.f32 %v1221, %v1221
      %v1235 = vmul.f32 %v1224, %v1224
      %v1236 = vadd.f32 %v1234, %v1235
      %v1237 = vrot.slane %v1236, 4
      %v1238 = vadd.f32 %v1236, %v1237
      %v1239 = vrot.slane %v1238, 2
      %v1240 = vadd.f32 %v1238, %v1239
      %v1241 = vrot.slane %v1240, 1
      %v1242 = vadd.f32 %v1240, %v1241
      %v1243 = vmul.f32 %v1233, 0.125
      %v1244 = vmul.f32 %v1242, 0.125
      %v1245 = vmul.f32 %v1243, %v1243
      %v1246 = vsub.f32 %v1244, %v1245
      %v1247 = vmax.f32 %v1246, 0.0
      %v1248 = vld [vmem:[%s5] sm:$0x1]
      %v1249 = vadd.f32 %v1247, 1e-05
      %v1250 = vrsqrt.pop %v1249
      %v1251 = vmul.f32 %v1248, %v1250
      %v1252 = vld [vmem:[%s6] sm:$0x1]
      %v1253 = vmul.f32 %v1243, %v1251
      %v1254 = vsub.f32 %v1252, %v1253
      %v1256 = vlaneseq
      %v1257 = vshrl.u32 %v1256, 7
      %v1258 = vsub.s32 0, %v1257
      %v1259 = vrot.slane %v1251, %v1258
      %v1261 = vmul.f32 %v1221, %v1259
      %v1262 = vmul.f32 %v1224, %v1259
      %v1264 = vlaneseq
      %v1265 = vshrl.u32 %v1264, 7
      %v1266 = vsub.s32 0, %v1265
      %v1267 = vrot.slane %v1254, %v1266
      %v1269 = vadd.f32 %v1261, %v1267
      %v1270 = vadd.f32 %v1262, %v1267
      %v1271 = vmax.f32 %v1269, 0.0
      %v1272 = vmax.f32 %v1270, 0.0
      %v1273 = vmul.f32 %v1271, %v996
      %v1274 = vmul.f32 %v1272, %v997
      %v1275 = vpack.c.bf16 %v1274, %v1273
      %v1276 = vld [vmem:[%s7] sm:$0xf]
      %v1277 = vld [vmem:[%s7 + $0x4] sm:$0xf]
      %v1278 = vld [vmem:[%s7 + $0x8] sm:$0xf]
      %v1279 = vld [vmem:[%s7 + $0xc] sm:$0xf]
      %v1280 = vld [vmem:[%s7 + $0x10] sm:$0xf]
      %v1281 = vld [vmem:[%s7 + $0x14] sm:$0xf]
      %v1282 = vld [vmem:[%s7 + $0x18] sm:$0xf]
      %v1283 = vld [vmem:[%s7 + $0x1c] sm:$0xf]
      %v1284 = vld [vmem:[%s7 + $0x20] sm:$0xf]
      %v1285 = vld [vmem:[%s7 + $0x24] sm:$0xf]
      %v1286 = vld [vmem:[%s7 + $0x28] sm:$0xf]
      %v1287 = vld [vmem:[%s7 + $0x2c] sm:$0xf]
      %v1288 = vld [vmem:[%s7 + $0x30] sm:$0xf]
      %v1289 = vld [vmem:[%s7 + $0x34] sm:$0xf]
      %v1290 = vld [vmem:[%s7 + $0x38] sm:$0xf]
      %v1291 = vld [vmem:[%s7 + $0x3c] sm:$0xf]
      %v1308 = vunpack.c.l.b16 %v1276
      %v1309 = vunpack.c.l.b16 %v1277
      %v1310 = vunpack.c.l.b16 %v1278
      %v1311 = vunpack.c.l.b16 %v1279
      %v1312 = vunpack.c.l.b16 %v1280
      %v1313 = vunpack.c.l.b16 %v1281
      %v1314 = vunpack.c.l.b16 %v1282
      %v1315 = vunpack.c.l.b16 %v1283
      %v1316 = vunpack.c.l.b16 %v1284
      %v1317 = vunpack.c.l.b16 %v1285
      %v1318 = vunpack.c.l.b16 %v1286
      %v1319 = vunpack.c.l.b16 %v1287
      %v1320 = vunpack.c.l.b16 %v1288
      %v1321 = vunpack.c.l.b16 %v1289
      %v1322 = vunpack.c.l.b16 %v1290
      %v1323 = vunpack.c.l.b16 %v1291
      %v1324 = vpack.c.b16 %v1309, %v1308
      %v1325 = vpack.c.b16 %v1311, %v1310
      %v1326 = vpack.c.b16 %v1313, %v1312
      %v1327 = vpack.c.b16 %v1315, %v1314
      %v1328 = vpack.c.b16 %v1317, %v1316
      %v1329 = vpack.c.b16 %v1319, %v1318
      %v1330 = vpack.c.b16 %v1321, %v1320
      %v1331 = vpack.c.b16 %v1323, %v1322
      %1340 = vmatprep.subr.bf16.mxu0 0
      %1341 = vmatpush1.bf16.msra.mxu0 %v1331
      %1342 = vmatprep.subr.bf16.mxu0 0
      %1343 = vmatpush1.bf16.msra.mxu0 %v1330
      %1344 = vmatprep.subr.bf16.mxu0 0
      %1345 = vmatpush1.bf16.msra.mxu0 %v1329
      %1346 = vmatprep.subr.bf16.mxu0 0
      %1347 = vmatpush1.bf16.msra.mxu0 %v1328
      %1348 = vmatprep.subr.bf16.mxu0 0
      %1349 = vmatpush1.bf16.msra.mxu0 %v1327
      %1350 = vmatprep.subr.bf16.mxu0 0
      %1351 = vmatpush1.bf16.msra.mxu0 %v1326
      %1352 = vmatprep.subr.bf16.mxu0 0
      %1353 = vmatpush1.bf16.msra.mxu0 %v1325
      %1354 = vmatprep.subr.bf16.mxu0 0
      %1355 = vmatpush1.bf16.msra.mxu0 %v1324
      %1356 = vmatprep.subr.bf16.mxu0 0
      %1357 = vmatpush2.bf16.msra.mxu0 0
      %1358 = vmatprep.subr.bf16.mxu0 0
      %1359 = vmatpush2.bf16.msra.mxu0 0
      %1360 = vmatprep.subr.bf16.mxu0 0
      %1361 = vmatpush2.bf16.msra.mxu0 0
      %1362 = vmatprep.subr.bf16.mxu0 0
      %1363 = vmatpush2.bf16.msra.mxu0 0
      %1364 = vmatprep.subr.bf16.mxu0 0
      %1365 = vmatpush2.bf16.msra.mxu0 0
      %1366 = vmatprep.subr.bf16.mxu0 0
      %1367 = vmatpush2.bf16.msra.mxu0 0
      %1368 = vmatprep.subr.bf16.mxu0 0
      %1369 = vmatpush2.bf16.msra.mxu0 0
      %1370 = vmatprep.subr.bf16.mxu0 0
      %1371 = vmatpush2.bf16.msra.mxu0 0
      %1372 = vmatprep.mubr.bf16.mxu0 0
      %1373 = vmatmul.mubr.bf16.gmra.mxu0 %v1275
      %v1374 = vpop.f32.mrf.mxu0
      %v1375 = vadd.f32 0.0, %v1374
      %v1376 = vpop.f32.mrf.mxu0
      %v1377 = vpop.f32.mrf.mxu0
      %v1378 = vadd.f32 0.0, %v1377
      %v1379 = vpop.f32.mrf.mxu0
      %1380 = vdwg.mxu0
      %vm1381 = vcmask 523264
      %v1382 = vsel %vm1381, %v1375, 0.0
      %v1383 = vsel %vm1381, %v1378, 0.0
      %v1384 = vadd.f32 %v1382, %v1383
      %v1385 = vrot.slane %v1384, 4
      %v1386 = vadd.f32 %v1384, %v1385
      %v1387 = vrot.slane %v1386, 2
      %v1388 = vadd.f32 %v1386, %v1387
      %v1389 = vrot.slane %v1388, 1
      %v1390 = vadd.f32 %v1388, %v1389
      %v1391 = vmul.f32 %v1375, %v1375
      %v1392 = vmul.f32 %v1378, %v1378
      %v1393 = vsel %vm1381, %v1391, 0.0
      %v1394 = vsel %vm1381, %v1392, 0.0
      %v1395 = vadd.f32 %v1393, %v1394
      %v1396 = vrot.slane %v1395, 4
      %v1397 = vadd.f32 %v1395, %v1396
      %v1398 = vrot.slane %v1397, 2
      %v1399 = vadd.f32 %v1397, %v1398
      %v1400 = vrot.slane %v1399, 1
      %v1401 = vadd.f32 %v1399, %v1400
      %v1402 = vmul.f32 %v1390, 0.125
      %v1403 = vmul.f32 %v1401, 0.125
      %v1404 = vmul.f32 %v1402, %v1402
      %v1405 = vsub.f32 %v1403, %v1404
      %v1406 = vmax.f32 %v1405, 0.0
      %v1407 = vld [vmem:[%s8] sm:$0x1]
      %v1408 = vadd.f32 %v1406, 1e-05
      %v1409 = vrsqrt.pop %v1408
      %v1410 = vmul.f32 %v1407, %v1409
      %v1411 = vld [vmem:[%s9] sm:$0x1]
      %v1412 = vmul.f32 %v1402, %v1410
      %v1413 = vsub.f32 %v1411, %v1412
      %v1415 = vlaneseq
      %v1416 = vshrl.u32 %v1415, 7
      %v1417 = vsub.s32 0, %v1416
      %v1418 = vrot.slane %v1410, %v1417
      %v1420 = vmul.f32 %v1375, %v1418
      %v1421 = vmul.f32 %v1378, %v1418
      %v1423 = vlaneseq
      %v1424 = vshrl.u32 %v1423, 7
      %v1425 = vsub.s32 0, %v1424
      %v1426 = vrot.slane %v1413, %v1425
      %v1428 = vadd.f32 %v1420, %v1426
      %v1429 = vadd.f32 %v1421, %v1426
      %v1430 = vmax.f32 %v1428, 0.0
      %v1431 = vmax.f32 %v1429, 0.0
      %v1432 = vmul.f32 %v1430, %v996
      %v1433 = vmul.f32 %v1431, %v997
      %v1434 = vpack.c.bf16 %v1433, %v1432
      %v1435 = vld [vmem:[%s10] sm:$0xf]
      %v1436 = vld [vmem:[%s10 + $0x4] sm:$0xf]
      %v1437 = vld [vmem:[%s10 + $0x8] sm:$0xf]
      %v1438 = vld [vmem:[%s10 + $0xc] sm:$0xf]
      %v1439 = vld [vmem:[%s10 + $0x10] sm:$0xf]
      %v1440 = vld [vmem:[%s10 + $0x14] sm:$0xf]
      %v1441 = vld [vmem:[%s10 + $0x18] sm:$0xf]
      %v1442 = vld [vmem:[%s10 + $0x1c] sm:$0xf]
      %v1451 = vunpack.c.l.b16 %v1435
      %v1452 = vunpack.c.l.b16 %v1436
      %v1453 = vunpack.c.l.b16 %v1437
      %v1454 = vunpack.c.l.b16 %v1438
      %v1455 = vunpack.c.l.b16 %v1439
      %v1456 = vunpack.c.l.b16 %v1440
      %v1457 = vunpack.c.l.b16 %v1441
      %v1458 = vunpack.c.l.b16 %v1442
      %v1459 = vpack.c.b16 %v1452, %v1451
      %v1460 = vpack.c.b16 %v1454, %v1453
      %v1461 = vpack.c.b16 %v1456, %v1455
      %v1462 = vpack.c.b16 %v1458, %v1457
      %v1468 = vsel %vm1381, %v1434, 0
      %1470 = vmatprep.subr.bf16.mxu0 0
      %1471 = vmatpush1.bf16.msra.mxu0 0
      %1472 = vmatprep.subr.bf16.mxu0 0
      %1473 = vmatpush1.bf16.msra.mxu0 0
      %1474 = vmatprep.subr.bf16.mxu0 0
      %1475 = vmatpush1.bf16.msra.mxu0 0
      %1476 = vmatprep.subr.bf16.mxu0 0
      %1477 = vmatpush1.bf16.msra.mxu0 0
      %1478 = vmatprep.subr.bf16.mxu0 0
      %1479 = vmatpush1.bf16.msra.mxu0 %v1462
      %1480 = vmatprep.subr.bf16.mxu0 0
      %1481 = vmatpush1.bf16.msra.mxu0 %v1461
      %1482 = vmatprep.subr.bf16.mxu0 0
      %1483 = vmatpush1.bf16.msra.mxu0 %v1460
      %1484 = vmatprep.subr.bf16.mxu0 0
      %1485 = vmatpush1.bf16.msra.mxu0 %v1459
      %1486 = vmatprep.subr.bf16.mxu0 0
      %1487 = vmatpush2.bf16.msra.mxu0 0
      %1488 = vmatprep.subr.bf16.mxu0 0
      %1489 = vmatpush2.bf16.msra.mxu0 0
      %1490 = vmatprep.subr.bf16.mxu0 0
      %1491 = vmatpush2.bf16.msra.mxu0 0
      %1492 = vmatprep.subr.bf16.mxu0 0
      %1493 = vmatpush2.bf16.msra.mxu0 0
      %1494 = vmatprep.subr.bf16.mxu0 0
      %1495 = vmatpush2.bf16.msra.mxu0 0
      %1496 = vmatprep.subr.bf16.mxu0 0
      %1497 = vmatpush2.bf16.msra.mxu0 0
      %1498 = vmatprep.subr.bf16.mxu0 0
      %1499 = vmatpush2.bf16.msra.mxu0 0
      %1500 = vmatprep.subr.bf16.mxu0 0
      %1501 = vmatpush2.bf16.msra.mxu0 0
      %1502 = vmatprep.mubr.bf16.mxu0 0
      %1503 = vmatmul.mubr.bf16.gmra.mxu0 %v1468
      %v1504 = vpop.f32.mrf.mxu0
      %v1505 = vadd.f32 0.0, %v1504
      %v1506 = vpop.f32.mrf.mxu0
      %v1507 = vpop.f32.mrf.mxu0
      %v1508 = vadd.f32 0.0, %v1507
      %v1509 = vpop.f32.mrf.mxu0
      %1510 = vdwg.mxu0
      %vm1511 = vcmask 261120
      %v1512 = vsel %vm1511, %v1505, 0.0
      %v1513 = vsel %vm1511, %v1508, 0.0
      %v1514 = vadd.f32 %v1512, %v1513
      %v1515 = vrot.slane %v1514, 4
      %v1516 = vadd.f32 %v1514, %v1515
      %v1517 = vrot.slane %v1516, 2
      %v1518 = vadd.f32 %v1516, %v1517
      %v1519 = vrot.slane %v1518, 1
      %v1520 = vadd.f32 %v1518, %v1519
      %v1521 = vmul.f32 %v1505, %v1505
      %v1522 = vmul.f32 %v1508, %v1508
      %v1523 = vsel %vm1511, %v1521, 0.0
      %v1524 = vsel %vm1511, %v1522, 0.0
      %v1525 = vadd.f32 %v1523, %v1524
      %v1526 = vrot.slane %v1525, 4
      %v1527 = vadd.f32 %v1525, %v1526
      %v1528 = vrot.slane %v1527, 2
      %v1529 = vadd.f32 %v1527, %v1528
      %v1530 = vrot.slane %v1529, 1
      %v1531 = vadd.f32 %v1529, %v1530
      %v1532 = vmul.f32 %v1520, 0.125
      %v1533 = vmul.f32 %v1531, 0.125
      %v1534 = vmul.f32 %v1532, %v1532
      %v1535 = vsub.f32 %v1533, %v1534
      %v1536 = vmax.f32 %v1535, 0.0
      %v1537 = vld [vmem:[%s11] sm:$0x1]
      %v1538 = vadd.f32 %v1536, 1e-05
      %v1539 = vrsqrt.pop %v1538
      %v1540 = vmul.f32 %v1537, %v1539
      %v1541 = vld [vmem:[%s12] sm:$0x1]
      %v1542 = vmul.f32 %v1532, %v1540
      %v1543 = vsub.f32 %v1541, %v1542
      %v1545 = vlaneseq
      %v1546 = vshrl.u32 %v1545, 7
      %v1547 = vsub.s32 0, %v1546
      %v1548 = vrot.slane %v1540, %v1547
      %v1550 = vmul.f32 %v1505, %v1548
      %v1551 = vmul.f32 %v1508, %v1548
      %v1553 = vlaneseq
      %v1554 = vshrl.u32 %v1553, 7
      %v1555 = vsub.s32 0, %v1554
      %v1556 = vrot.slane %v1543, %v1555
      %v1558 = vadd.f32 %v1550, %v1556
      %v1559 = vadd.f32 %v1551, %v1556
      %v1560 = vmax.f32 %v1558, 0.0
      %v1561 = vmax.f32 %v1559, 0.0
      %v1562 = vmul.f32 %v1560, %v996
      %v1563 = vmul.f32 %v1561, %v997
      %v1564 = vpack.c.bf16 %v1563, %v1562
      %v1565 = vld [vmem:[%s13] sm:$0xf]
      %v1566 = vld [vmem:[%s13 + $0x4] sm:$0xf]
      %v1567 = vld [vmem:[%s13 + $0x8] sm:$0xf]
      %v1568 = vld [vmem:[%s13 + $0xc] sm:$0xf]
      %v1569 = vld [vmem:[%s14] sm:$0x1]
      %v1571 = vlaneseq
      %v1572 = vshrl.u32 %v1571, 7
      %v1573 = vsub.s32 0, %v1572
      %v1574 = vrot.slane %v1569, %v1573
      %v1580 = vunpack.c.l.b16 %v1565
      %v1581 = vunpack.c.l.b16 %v1566
      %v1582 = vunpack.c.l.b16 %v1567
      %v1583 = vunpack.c.l.b16 %v1568
      %v1584 = vpack.c.b16 %v1581, %v1580
      %v1585 = vpack.c.b16 %v1583, %v1582
      %v1589 = vsel %vm1511, %v1564, 0
      %1591 = vmatprep.subr.bf16.mxu0 0
      %1592 = vmatpush1.bf16.msra.mxu0 0
      %1593 = vmatprep.subr.bf16.mxu0 0
      %1594 = vmatpush1.bf16.msra.mxu0 0
      %1595 = vmatprep.subr.bf16.mxu0 0
      %1596 = vmatpush1.bf16.msra.mxu0 0
      %1597 = vmatprep.subr.bf16.mxu0 0
      %1598 = vmatpush1.bf16.msra.mxu0 0
      %1599 = vmatprep.subr.bf16.mxu0 0
      %1600 = vmatpush1.bf16.msra.mxu0 0
      %1601 = vmatprep.subr.bf16.mxu0 0
      %1602 = vmatpush1.bf16.msra.mxu0 0
      %1603 = vmatprep.subr.bf16.mxu0 0
      %1604 = vmatpush1.bf16.msra.mxu0 %v1585
      %1605 = vmatprep.subr.bf16.mxu0 0
      %1606 = vmatpush1.bf16.msra.mxu0 %v1584
      %1607 = vmatprep.subr.bf16.mxu0 0
      %1608 = vmatpush2.bf16.msra.mxu0 0
      %1609 = vmatprep.subr.bf16.mxu0 0
      %1610 = vmatpush2.bf16.msra.mxu0 0
      %1611 = vmatprep.subr.bf16.mxu0 0
      %1612 = vmatpush2.bf16.msra.mxu0 0
      %1613 = vmatprep.subr.bf16.mxu0 0
      %1614 = vmatpush2.bf16.msra.mxu0 0
      %1615 = vmatprep.subr.bf16.mxu0 0
      %1616 = vmatpush2.bf16.msra.mxu0 0
      %1617 = vmatprep.subr.bf16.mxu0 0
      %1618 = vmatpush2.bf16.msra.mxu0 0
      %1619 = vmatprep.subr.bf16.mxu0 0
      %1620 = vmatpush2.bf16.msra.mxu0 0
      %1621 = vmatprep.subr.bf16.mxu0 0
      %1622 = vmatpush2.bf16.msra.mxu0 0
      %1623 = vmatprep.mubr.bf16.mxu0 0
      %1624 = vmatmul.mubr.bf16.gmra.mxu0 %v1589
      %v1625 = vpop.f32.mrf.mxu0
      %v1626 = vadd.f32 %v1574, %v1625
      %v1627 = vpop.f32.mrf.mxu0
      %v1628 = vpop.f32.mrf.mxu0
      %v1629 = vadd.f32 %v1574, %v1628
      %v1630 = vpop.f32.mrf.mxu0
      %1631 = vdwg.mxu0
      %v1632 = vmax.f32 %v1626, 0.0
      %v1633 = vmax.f32 %v1629, 0.0
      %v1634 = vpack.c.bf16 %v1633, %v1632
      %v1635 = vld [vmem:[%s15] sm:$0xf]
      %v1636 = vld [vmem:[%s15 + $0x4] sm:$0xf]
      %v1637 = vld [vmem:[%s16] sm:$0x1]
      %v1639 = vlaneseq
      %v1640 = vshrl.u32 %v1639, 7
      %v1641 = vsub.s32 0, %v1640
      %v1642 = vrot.slane %v1637, %v1641
      %v1646 = vunpack.c.l.b16 %v1635
      %v1647 = vunpack.c.l.b16 %v1636
      %v1648 = vpack.c.b16 %v1647, %v1646
      %v1651 = vsel %vm712, %v1634, 0
      %1653 = vmatprep.subr.bf16.mxu0 0
      %1654 = vmatpush1.bf16.msra.mxu0 0
      %1655 = vmatprep.subr.bf16.mxu0 0
      %1656 = vmatpush1.bf16.msra.mxu0 0
      %1657 = vmatprep.subr.bf16.mxu0 0
      %1658 = vmatpush1.bf16.msra.mxu0 0
      %1659 = vmatprep.subr.bf16.mxu0 0
      %1660 = vmatpush1.bf16.msra.mxu0 0
      %1661 = vmatprep.subr.bf16.mxu0 0
      %1662 = vmatpush1.bf16.msra.mxu0 0
      %1663 = vmatprep.subr.bf16.mxu0 0
      %1664 = vmatpush1.bf16.msra.mxu0 0
      %1665 = vmatprep.subr.bf16.mxu0 0
      %1666 = vmatpush1.bf16.msra.mxu0 0
      %1667 = vmatprep.subr.bf16.mxu0 0
      %1668 = vmatpush1.bf16.msra.mxu0 %v1648
      %1669 = vmatprep.subr.bf16.mxu0 0
      %1670 = vmatpush2.bf16.msra.mxu0 0
      %1671 = vmatprep.subr.bf16.mxu0 0
      %1672 = vmatpush2.bf16.msra.mxu0 0
      %1673 = vmatprep.subr.bf16.mxu0 0
      %1674 = vmatpush2.bf16.msra.mxu0 0
      %1675 = vmatprep.subr.bf16.mxu0 0
      %1676 = vmatpush2.bf16.msra.mxu0 0
      %1677 = vmatprep.subr.bf16.mxu0 0
      %1678 = vmatpush2.bf16.msra.mxu0 0
      %1679 = vmatprep.subr.bf16.mxu0 0
      %1680 = vmatpush2.bf16.msra.mxu0 0
      %1681 = vmatprep.subr.bf16.mxu0 0
      %1682 = vmatpush2.bf16.msra.mxu0 0
      %1683 = vmatprep.subr.bf16.mxu0 0
      %1684 = vmatpush2.bf16.msra.mxu0 0
      %1685 = vmatprep.mubr.bf16.mxu0 0
      %1686 = vmatmul.mubr.bf16.gmra.mxu0 %v1651
      %v1687 = vpop.f32.mrf.mxu0
      %v1688 = vadd.f32 %v1642, %v1687
      %v1689 = vpop.f32.mrf.mxu0
      %v1690 = vpop.f32.mrf.mxu0
      %v1691 = vadd.f32 %v1642, %v1690
      %v1692 = vpop.f32.mrf.mxu0
      %1693 = vdwg.mxu0
      %vm1694 = vcmask 80896
      %1695 = vst.msk [vmem:[%s17] sm:$0xff] %vm1694, %v1688
      %1696 = vst.msk [vmem:[%s17 + $0x8] sm:$0xff] %vm1694, %v1691
    $region81: #{mlp_with_batchnorm.1} parent=1 // pred_fallthru
      _
    // Predicated region
    $region82: #{mlp_with_batchnorm.1} parent=1 // pred_check
      _
    $region83: #{mlp_with_batchnorm.1} parent=1 // pred_check_branch
      %1698 = sbr.rel (0) target = $region85
    $region84: #{mlp_with_batchnorm.1} parent=1 // pred_region
      _
    $region85: #{mlp_with_batchnorm.1} parent=1 // pred_fallthru
      _
    // Predicated region
    $region86: #{mlp_with_batchnorm.1} parent=1 // pred_check
      _
    $region87: #{mlp_with_batchnorm.1} parent=1 // pred_check_branch
      %1700 = sbr.rel (0) target = $region89
    $region88: #{mlp_with_batchnorm.1} parent=1 // pred_region
      _
    $region89: #{mlp_with_batchnorm.1} parent=1 // pred_fallthru
      _
    %1701 = vsyncpa [#allocation6], 1

</llo_original>
